<compile_context>
chip_gen: v7x
topology: tpu7x:2x2x1
jax: 0.10.0
libtpu: 0.0.40
codegen_flags: <defaults>
</compile_context>

<pallas_src>
import jax
import jax.numpy as jnp
from jax.experimental import pallas as pl
from jax.experimental.pallas import tpu as pltpu

INPUT_SIZE = 1
HIDDEN = 32
NUM_LAYERS = 2
OUT_FEATURES = 12
HEAD_PAD = 128   # fused-head output width: cols [0:12] = policy, col 12 = value
SUBLANE = 8      # f32 sublane quantum -> batch padding target


def lstm_kernel(pre0_ref, len_ref,
                whh0_ref, wih1_ref, whh1_ref, b1_ref,
                wh_ref, bh_ref,
                out_ref):
    """Fully unrolled 2-layer LSTM recurrence + fused policy/value heads.

    pre0_ref : (T, B, 4H) f32   hoisted layer-0 input projection x*W_ih0 + b0
    len_ref  : (B, H)     i32   per-row sequence length, pre-broadcast to H lanes
    whh0_ref : (H, 4H)    f32   layer-0 recurrent weights (transposed)
    wih1_ref : (H, 4H)    f32   layer-1 input weights (transposed)
    whh1_ref : (H, 4H)    f32   layer-1 recurrent weights (transposed)
    b1_ref   : (1, 4H)    f32   layer-1 fused bias (b_ih + b_hh)
    wh_ref   : (H, 128)   f32   fused policy/value head weights (zero padded)
    bh_ref   : (1, 128)   f32   fused head bias
    out_ref  : (B, 128)   f32   lane-dense fused head output
    """
    T, B, _ = pre0_ref.shape
    H = whh0_ref.shape[0]

    whh0 = whh0_ref[...]
    wih1 = wih1_ref[...]
    whh1 = whh1_ref[...]
    b1 = b1_ref[...]
    len_bh = len_ref[...]   # hoisted full-width mask operand (no per-step broadcast)

    def gates_to_hc(gates, c):
        # Two full-width EUP pushes over the whole (B, 4H) gate tile, then
        # static lane slices for the elementwise combine (PyTorch order i,f,g,o).
        s = jax.nn.sigmoid(gates)
        th = jnp.tanh(gates)
        i = s[:, 0:H]
        f = s[:, H:2 * H]
        g = th[:, 2 * H:3 * H]
        o = s[:, 3 * H:4 * H]
        c_new = f * c + i * g
        return o * jnp.tanh(c_new), c_new

    zeros = jnp.zeros((B, H), jnp.float32)
    h0, c0, h1, c1 = zeros, zeros, zeros, zeros

    # T is static -> fully unrolled recurrence; all indices static and the
    # whole dependency DAG is visible to the scheduler.
    # TODO(synk): stage whh0/wih1/whh1 once via pltpu.matmul_push_rhs /
    # matmul_acc_lhs / matmul_pop so the time-invariant RHS stays resident in
    # the MXU across all T steps (per-step fill drops 96 -> 8 rows). Kept on
    # jnp.dot here for portability across the v5e/v6e (MRF) vs v7x (MRB)
    # result-path differences.
    for t in range(T):
        # Layer 0: only the recurrent matmul is on the per-step chain
        # (K=H=32, N=4H=128); the input projection was hoisted to the wrapper.
        g0 = jnp.dot(h0, whh0, preferred_element_type=jnp.float32) + pre0_ref[t]
        h0, c0 = gates_to_hc(g0, c0)

        # Layer 1: two independent K=32 matmuls summed on the VPU — same MXU
        # row count as a fused K=64 dot, but no per-step lane concatenate, and
        # the h1@whh1 product does not depend on this step's layer-0 output.
        g1 = (jnp.dot(h0, wih1, preferred_element_type=jnp.float32)
              + jnp.dot(h1, whh1, preferred_element_type=jnp.float32)
              + b1)
        h1n, c1 = gates_to_hc(g1, c1)

        # Packed-sequence semantics: freeze h1 once t >= length[b]. The mask is
        # monotone and the select elementwise, so leaving h0/c0/c1 unmasked
        # cannot leak into the exposed output (verified against the reference).
        # TODO(synk): if carried state (h_n/c_n for both layers) is ever
        # returned, h0/c0/c1 must be masked here as well.
        h1 = jnp.where(len_bh > t, h1n, h1)

    # Fused policy/value heads: one MXU push, one lane-dense (B, 128) store.
    out_ref[...] = (jnp.dot(h1, wh_ref[...], preferred_element_type=jnp.float32)
                    + bh_ref[...])


def pack_params(p):
    """One-time, time-invariant weight packing (keep OUT of the per-call path)."""
    H = HIDDEN
    w_heads = jnp.zeros((H, HEAD_PAD), jnp.float32)
    w_heads = w_heads.at[:, :OUT_FEATURES].set(p['w_p'].T)
    w_heads = w_heads.at[:, OUT_FEATURES:OUT_FEATURES + 1].set(p['w_v'].T)
    b_heads = jnp.zeros((1, HEAD_PAD), jnp.float32)
    b_heads = b_heads.at[:, :OUT_FEATURES].set(p['b_p'])
    b_heads = b_heads.at[:, OUT_FEATURES].set(p['b_v'][0])
    packed = {
        'wih0_row': p['w_ih_l0'].T.reshape(1, 4 * H),            # I == 1
        'b0': (p['b_ih_l0'] + p['b_hh_l0']).reshape(1, 4 * H),
        'whh0': p['w_hh_l0'].T,                                   # (H, 4H)
        'wih1': p['w_ih_l1'].T,                                   # (H, 4H)
        'whh1': p['w_hh_l1'].T,                                   # (H, 4H)
        'b1': (p['b_ih_l1'] + p['b_hh_l1']).reshape(1, 4 * H),
        'w_heads': w_heads,
        'b_heads': b_heads,
    }
    return jax.tree_util.tree_map(lambda a: jnp.asarray(a, jnp.float32), packed)


@jax.jit
def lstm_forward(x, lengths, packed):
    """x: (B, T, I) float32 batch-first (PyTorch layout); lengths: (B,) int."""
    B, T, _ = x.shape
    H = HIDDEN
    B_pad = max(SUBLANE, -(-B // SUBLANE) * SUBLANE)

    # Per-call input prep (one small fused XLA op): hoisted layer-0 input
    # projection (avoids the degenerate (T,B,1) lane operand in-kernel),
    # time-major transpose, and batch padding to the f32 sublane quantum.
    pre0 = (jnp.transpose(x.astype(jnp.float32), (1, 0, 2))        # (T, B, 1)
            * packed['wih0_row'][None] + packed['b0'][None])        # (T, B, 4H)
    pre0 = jnp.pad(pre0, ((0, 0), (0, B_pad - B), (0, 0)))

    len_bh = jnp.pad(
        jnp.broadcast_to(lengths.astype(jnp.int32)[:, None], (B, H)),
        ((0, B_pad - B), (0, 0)))                                    # (B_pad, H)

    ins = [pre0, len_bh, packed['whh0'], packed['wih1'], packed['whh1'],
           packed['b1'], packed['w_heads'], packed['b_heads']]

    vmem = lambda: pl.BlockSpec(memory_space=pltpu.MemorySpace.VMEM)
    out = pl.pallas_call(
        lstm_kernel,
        out_shape=jax.ShapeDtypeStruct((B_pad, HEAD_PAD), jnp.float32),
        in_specs=[vmem() for _ in ins],
        out_specs=vmem(),
    )(*ins)

    policy = out[:B, :OUT_FEATURES]
    value = out[:B, OUT_FEATURES:OUT_FEATURES + 1]
    return policy, value


def init_params(key):
    """Deterministic synthetic parameters with nn.LSTM / nn.Linear shapes."""
    H, I = HIDDEN, INPUT_SIZE
    ks = jax.random.split(key, 12)
    u = lambda k, shape: jax.random.uniform(k, shape, jnp.float32, -0.2, 0.2)
    return {
        'w_ih_l0': u(ks[0], (4 * H, I)),
        'w_hh_l0': u(ks[1], (4 * H, H)),
        'b_ih_l0': u(ks[2], (4 * H,)),
        'b_hh_l0': u(ks[3], (4 * H,)),
        'w_ih_l1': u(ks[4], (4 * H, H)),
        'w_hh_l1': u(ks[5], (4 * H, H)),
        'b_ih_l1': u(ks[6], (4 * H,)),
        'b_hh_l1': u(ks[7], (4 * H,)),
        'w_p': u(ks[8], (OUT_FEATURES, H)),
        'b_p': u(ks[9], (OUT_FEATURES,)),
        'w_v': u(ks[10], (1, H)),
        'b_v': u(ks[11], (1,)),
    }


def ref_forward(x, lengths, p):
    """Pure-JAX reference mirroring packed-LSTM semantics (for verification)."""
    B, T, _ = x.shape
    H = HIDDEN
    h0 = c0 = h1 = c1 = jnp.zeros((B, H), jnp.float32)

    def cell(x_t, h, c, wih, whh, bih, bhh):
        g = x_t @ wih.T + bih + h @ whh.T + bhh
        i = jax.nn.sigmoid(g[:, :H])
        f = jax.nn.sigmoid(g[:, H:2 * H])
        gg = jnp.tanh(g[:, 2 * H:3 * H])
        o = jax.nn.sigmoid(g[:, 3 * H:])
        c2 = f * c + i * gg
        return o * jnp.tanh(c2), c2

    for t in range(T):
        xt = x[:, t, :].astype(jnp.float32)
        m = (lengths > t)[:, None]
        h0n, c0n = cell(xt, h0, c0, p['w_ih_l0'], p['w_hh_l0'], p['b_ih_l0'], p['b_hh_l0'])
        h1n, c1n = cell(h0n, h1, c1, p['w_ih_l1'], p['w_hh_l1'], p['b_ih_l1'], p['b_hh_l1'])
        h0 = jnp.where(m, h0n, h0)
        c0 = jnp.where(m, c0n, c0)
        h1 = jnp.where(m, h1n, h1)
        c1 = jnp.where(m, c1n, c1)
    return h1 @ p['w_p'].T + p['b_p'], h1 @ p['w_v'].T + p['b_v']


if __name__ == "__main__":
    key = jax.random.PRNGKey(0)
    kx, kp = jax.random.split(key)

    B, T = 4, 8
    x = jax.random.normal(kx, (B, T, INPUT_SIZE), jnp.float32)   # batch-first like PyTorch
    lengths = jnp.array([8, 5, 3, 1], dtype=jnp.int32)
    params = init_params(kp)
    packed = pack_params(params)   # one-time weight prep, outside the hot path

    policy, value = lstm_forward(x, lengths, packed)
    policy, value = jax.block_until_ready((policy, value))

    ref_policy, ref_value = ref_forward(x, lengths, params)
    assert policy.shape == (B, OUT_FEATURES) and value.shape == (B, 1)
    assert jnp.allclose(policy, ref_policy, atol=1e-4, rtol=1e-4)
    assert jnp.allclose(value, ref_value, atol=1e-4, rtol=1e-4)

    print("KERNEL_OK")
</pallas_src>

<mosaic_0001>
module attributes {stable_mosaic.version = 11 : i64} {
  func.func @lstm_kernel(%arg0: memref<8x8x128xf32, #tpu.memory_space<vmem>>, %arg1: memref<8x32xi32, #tpu.memory_space<vmem>>, %arg2: memref<32x128xf32, #tpu.memory_space<vmem>>, %arg3: memref<32x128xf32, #tpu.memory_space<vmem>>, %arg4: memref<32x128xf32, #tpu.memory_space<vmem>>, %arg5: memref<1x128xf32, #tpu.memory_space<vmem>>, %arg6: memref<32x128xf32, #tpu.memory_space<vmem>>, %arg7: memref<1x128xf32, #tpu.memory_space<vmem>>, %arg8: memref<8x128xf32, #tpu.memory_space<vmem>>) attributes {dimension_semantics = [], scalar_prefetch = 0 : i64, scratch_operands = 0 : i64, tpu.core_type = #tpu.core_type<tc>} {
    %c0 = arith.constant 0 : index
    %c0_0 = arith.constant 0 : index
    %0 = vector.load %arg2[%c0, %c0_0] : memref<32x128xf32, #tpu.memory_space<vmem>>, vector<32x128xf32>
    %c0_1 = arith.constant 0 : index
    %c0_2 = arith.constant 0 : index
    %1 = vector.load %arg3[%c0_1, %c0_2] : memref<32x128xf32, #tpu.memory_space<vmem>>, vector<32x128xf32>
    %c0_3 = arith.constant 0 : index
    %c0_4 = arith.constant 0 : index
    %2 = vector.load %arg4[%c0_3, %c0_4] : memref<32x128xf32, #tpu.memory_space<vmem>>, vector<32x128xf32>
    %c0_5 = arith.constant 0 : index
    %c0_6 = arith.constant 0 : index
    %3 = vector.load %arg5[%c0_5, %c0_6] : memref<1x128xf32, #tpu.memory_space<vmem>>, vector<1x128xf32>
    %c0_7 = arith.constant 0 : index
    %c0_8 = arith.constant 0 : index
    %4 = vector.load %arg1[%c0_7, %c0_8] : memref<8x32xi32, #tpu.memory_space<vmem>>, vector<8x32xi32>
    %cst = arith.constant 0.000000e+00 : f32
    %5 = vector.broadcast %cst : f32 to vector<8x32xf32>
    %cst_9 = arith.constant dense<0.000000e+00> : vector<8x128xf32>
    %6 = tpu.matmul %5, %0, %cst_9 {dimension_numbers = #tpu.dot_dimension_numbers<[1], [0], [0], [1], [0, 0, 1, 1], [], []>} : vector<8x32xf32>, vector<32x128xf32>, vector<8x128xf32> -> vector<8x128xf32>
    %c0_10 = arith.constant 0 : index
    %c0_11 = arith.constant 0 : index
    %c0_12 = arith.constant 0 : index
    %7 = vector.load %arg0[%c0_10, %c0_11, %c0_12] : memref<8x8x128xf32, #tpu.memory_space<vmem>>, vector<1x8x128xf32>
    %8 = vector.shape_cast %7 : vector<1x8x128xf32> to vector<8x128xf32>
    %9 = arith.addf %6, %8 : vector<8x128xf32>
    %10 = arith.negf %9 : vector<8x128xf32>
    %11 = math.exp %10 : vector<8x128xf32>
    %cst_13 = arith.constant 1.000000e+00 : f32
    %12 = vector.broadcast %cst_13 : f32 to vector<8x128xf32>
    %13 = arith.addf %12, %11 : vector<8x128xf32>
    %14 = arith.divf %12, %13 : vector<8x128xf32>
    %15 = math.tanh %9 : vector<8x128xf32>
    %16 = vector.extract_strided_slice %14 {offsets = [0, 0], sizes = [8, 32], strides = [1, 1]} : vector<8x128xf32> to vector<8x32xf32>
    %17 = vector.extract_strided_slice %14 {offsets = [0, 32], sizes = [8, 32], strides = [1, 1]} : vector<8x128xf32> to vector<8x32xf32>
    %18 = vector.extract_strided_slice %15 {offsets = [0, 64], sizes = [8, 32], strides = [1, 1]} : vector<8x128xf32> to vector<8x32xf32>
    %19 = vector.extract_strided_slice %14 {offsets = [0, 96], sizes = [8, 32], strides = [1, 1]} : vector<8x128xf32> to vector<8x32xf32>
    %20 = arith.mulf %17, %5 : vector<8x32xf32>
    %21 = arith.mulf %16, %18 : vector<8x32xf32>
    %22 = arith.addf %20, %21 : vector<8x32xf32>
    %23 = math.tanh %22 : vector<8x32xf32>
    %24 = arith.mulf %19, %23 : vector<8x32xf32>
    %cst_14 = arith.constant dense<0.000000e+00> : vector<8x128xf32>
    %25 = tpu.matmul %24, %1, %cst_14 {dimension_numbers = #tpu.dot_dimension_numbers<[1], [0], [0], [1], [0, 0, 1, 1], [], []>} : vector<8x32xf32>, vector<32x128xf32>, vector<8x128xf32> -> vector<8x128xf32>
    %cst_15 = arith.constant dense<0.000000e+00> : vector<8x128xf32>
    %26 = tpu.matmul %5, %2, %cst_15 {dimension_numbers = #tpu.dot_dimension_numbers<[1], [0], [0], [1], [0, 0, 1, 1], [], []>} : vector<8x32xf32>, vector<32x128xf32>, vector<8x128xf32> -> vector<8x128xf32>
    %27 = arith.addf %25, %26 : vector<8x128xf32>
    %28 = vector.broadcast %3 : vector<1x128xf32> to vector<8x128xf32>
    %29 = arith.addf %27, %28 : vector<8x128xf32>
    %30 = arith.negf %29 : vector<8x128xf32>
    %31 = math.exp %30 : vector<8x128xf32>
    %cst_16 = arith.constant 1.000000e+00 : f32
    %32 = vector.broadcast %cst_16 : f32 to vector<8x128xf32>
    %33 = arith.addf %32, %31 : vector<8x128xf32>
    %34 = arith.divf %32, %33 : vector<8x128xf32>
    %35 = math.tanh %29 : vector<8x128xf32>
    %36 = vector.extract_strided_slice %34 {offsets = [0, 0], sizes = [8, 32], strides = [1, 1]} : vector<8x128xf32> to vector<8x32xf32>
    %37 = vector.extract_strided_slice %34 {offsets = [0, 32], sizes = [8, 32], strides = [1, 1]} : vector<8x128xf32> to vector<8x32xf32>
    %38 = vector.extract_strided_slice %35 {offsets = [0, 64], sizes = [8, 32], strides = [1, 1]} : vector<8x128xf32> to vector<8x32xf32>
    %39 = vector.extract_strided_slice %34 {offsets = [0, 96], sizes = [8, 32], strides = [1, 1]} : vector<8x128xf32> to vector<8x32xf32>
    %40 = arith.mulf %37, %5 : vector<8x32xf32>
    %41 = arith.mulf %36, %38 : vector<8x32xf32>
    %42 = arith.addf %40, %41 : vector<8x32xf32>
    %43 = math.tanh %42 : vector<8x32xf32>
    %44 = arith.mulf %39, %43 : vector<8x32xf32>
    %c0_i32 = arith.constant 0 : i32
    %45 = vector.broadcast %c0_i32 : i32 to vector<8x32xi32>
    %46 = arith.cmpi sgt, %4, %45 : vector<8x32xi32>
    %47 = arith.select %46, %44, %5 : vector<8x32xi1>, vector<8x32xf32>
    %cst_17 = arith.constant dense<0.000000e+00> : vector<8x128xf32>
    %48 = tpu.matmul %24, %0, %cst_17 {dimension_numbers = #tpu.dot_dimension_numbers<[1], [0], [0], [1], [0, 0, 1, 1], [], []>} : vector<8x32xf32>, vector<32x128xf32>, vector<8x128xf32> -> vector<8x128xf32>
    %c1 = arith.constant 1 : index
    %c0_18 = arith.constant 0 : index
    %c0_19 = arith.constant 0 : index
    %49 = vector.load %arg0[%c1, %c0_18, %c0_19] : memref<8x8x128xf32, #tpu.memory_space<vmem>>, vector<1x8x128xf32>
    %50 = vector.shape_cast %49 : vector<1x8x128xf32> to vector<8x128xf32>
    %51 = arith.addf %48, %50 : vector<8x128xf32>
    %52 = arith.negf %51 : vector<8x128xf32>
    %53 = math.exp %52 : vector<8x128xf32>
    %cst_20 = arith.constant 1.000000e+00 : f32
    %54 = vector.broadcast %cst_20 : f32 to vector<8x128xf32>
    %55 = arith.addf %54, %53 : vector<8x128xf32>
    %56 = arith.divf %54, %55 : vector<8x128xf32>
    %57 = math.tanh %51 : vector<8x128xf32>
    %58 = vector.extract_strided_slice %56 {offsets = [0, 0], sizes = [8, 32], strides = [1, 1]} : vector<8x128xf32> to vector<8x32xf32>
    %59 = vector.extract_strided_slice %56 {offsets = [0, 32], sizes = [8, 32], strides = [1, 1]} : vector<8x128xf32> to vector<8x32xf32>
    %60 = vector.extract_strided_slice %57 {offsets = [0, 64], sizes = [8, 32], strides = [1, 1]} : vector<8x128xf32> to vector<8x32xf32>
    %61 = vector.extract_strided_slice %56 {offsets = [0, 96], sizes = [8, 32], strides = [1, 1]} : vector<8x128xf32> to vector<8x32xf32>
    %62 = arith.mulf %59, %22 : vector<8x32xf32>
    %63 = arith.mulf %58, %60 : vector<8x32xf32>
    %64 = arith.addf %62, %63 : vector<8x32xf32>
    %65 = math.tanh %64 : vector<8x32xf32>
    %66 = arith.mulf %61, %65 : vector<8x32xf32>
    %cst_21 = arith.constant dense<0.000000e+00> : vector<8x128xf32>
    %67 = tpu.matmul %66, %1, %cst_21 {dimension_numbers = #tpu.dot_dimension_numbers<[1], [0], [0], [1], [0, 0, 1, 1], [], []>} : vector<8x32xf32>, vector<32x128xf32>, vector<8x128xf32> -> vector<8x128xf32>
    %cst_22 = arith.constant dense<0.000000e+00> : vector<8x128xf32>
    %68 = tpu.matmul %47, %2, %cst_22 {dimension_numbers = #tpu.dot_dimension_numbers<[1], [0], [0], [1], [0, 0, 1, 1], [], []>} : vector<8x32xf32>, vector<32x128xf32>, vector<8x128xf32> -> vector<8x128xf32>
    %69 = arith.addf %67, %68 : vector<8x128xf32>
    %70 = vector.broadcast %3 : vector<1x128xf32> to vector<8x128xf32>
    %71 = arith.addf %69, %70 : vector<8x128xf32>
    %72 = arith.negf %71 : vector<8x128xf32>
    %73 = math.exp %72 : vector<8x128xf32>
    %cst_23 = arith.constant 1.000000e+00 : f32
    %74 = vector.broadcast %cst_23 : f32 to vector<8x128xf32>
    %75 = arith.addf %74, %73 : vector<8x128xf32>
    %76 = arith.divf %74, %75 : vector<8x128xf32>
    %77 = math.tanh %71 : vector<8x128xf32>
    %78 = vector.extract_strided_slice %76 {offsets = [0, 0], sizes = [8, 32], strides = [1, 1]} : vector<8x128xf32> to vector<8x32xf32>
    %79 = vector.extract_strided_slice %76 {offsets = [0, 32], sizes = [8, 32], strides = [1, 1]} : vector<8x128xf32> to vector<8x32xf32>
    %80 = vector.extract_strided_slice %77 {offsets = [0, 64], sizes = [8, 32], strides = [1, 1]} : vector<8x128xf32> to vector<8x32xf32>
    %81 = vector.extract_strided_slice %76 {offsets = [0, 96], sizes = [8, 32], strides = [1, 1]} : vector<8x128xf32> to vector<8x32xf32>
    %82 = arith.mulf %79, %42 : vector<8x32xf32>
    %83 = arith.mulf %78, %80 : vector<8x32xf32>
    %84 = arith.addf %82, %83 : vector<8x32xf32>
    %85 = math.tanh %84 : vector<8x32xf32>
    %86 = arith.mulf %81, %85 : vector<8x32xf32>
    %c1_i32 = arith.constant 1 : i32
    %87 = vector.broadcast %c1_i32 : i32 to vector<8x32xi32>
    %88 = arith.cmpi sgt, %4, %87 : vector<8x32xi32>
    %89 = arith.select %88, %86, %47 : vector<8x32xi1>, vector<8x32xf32>
    %cst_24 = arith.constant dense<0.000000e+00> : vector<8x128xf32>
    %90 = tpu.matmul %66, %0, %cst_24 {dimension_numbers = #tpu.dot_dimension_numbers<[1], [0], [0], [1], [0, 0, 1, 1], [], []>} : vector<8x32xf32>, vector<32x128xf32>, vector<8x128xf32> -> vector<8x128xf32>
    %c2 = arith.constant 2 : index
    %c0_25 = arith.constant 0 : index
    %c0_26 = arith.constant 0 : index
    %91 = vector.load %arg0[%c2, %c0_25, %c0_26] : memref<8x8x128xf32, #tpu.memory_space<vmem>>, vector<1x8x128xf32>
    %92 = vector.shape_cast %91 : vector<1x8x128xf32> to vector<8x128xf32>
    %93 = arith.addf %90, %92 : vector<8x128xf32>
    %94 = arith.negf %93 : vector<8x128xf32>
    %95 = math.exp %94 : vector<8x128xf32>
    %cst_27 = arith.constant 1.000000e+00 : f32
    %96 = vector.broadcast %cst_27 : f32 to vector<8x128xf32>
    %97 = arith.addf %96, %95 : vector<8x128xf32>
    %98 = arith.divf %96, %97 : vector<8x128xf32>
    %99 = math.tanh %93 : vector<8x128xf32>
    %100 = vector.extract_strided_slice %98 {offsets = [0, 0], sizes = [8, 32], strides = [1, 1]} : vector<8x128xf32> to vector<8x32xf32>
    %101 = vector.extract_strided_slice %98 {offsets = [0, 32], sizes = [8, 32], strides = [1, 1]} : vector<8x128xf32> to vector<8x32xf32>
    %102 = vector.extract_strided_slice %99 {offsets = [0, 64], sizes = [8, 32], strides = [1, 1]} : vector<8x128xf32> to vector<8x32xf32>
    %103 = vector.extract_strided_slice %98 {offsets = [0, 96], sizes = [8, 32], strides = [1, 1]} : vector<8x128xf32> to vector<8x32xf32>
    %104 = arith.mulf %101, %64 : vector<8x32xf32>
    %105 = arith.mulf %100, %102 : vector<8x32xf32>
    %106 = arith.addf %104, %105 : vector<8x32xf32>
    %107 = math.tanh %106 : vector<8x32xf32>
    %108 = arith.mulf %103, %107 : vector<8x32xf32>
    %cst_28 = arith.constant dense<0.000000e+00> : vector<8x128xf32>
    %109 = tpu.matmul %108, %1, %cst_28 {dimension_numbers = #tpu.dot_dimension_numbers<[1], [0], [0], [1], [0, 0, 1, 1], [], []>} : vector<8x32xf32>, vector<32x128xf32>, vector<8x128xf32> -> vector<8x128xf32>
    %cst_29 = arith.constant dense<0.000000e+00> : vector<8x128xf32>
    %110 = tpu.matmul %89, %2, %cst_29 {dimension_numbers = #tpu.dot_dimension_numbers<[1], [0], [0], [1], [0, 0, 1, 1], [], []>} : vector<8x32xf32>, vector<32x128xf32>, vector<8x128xf32> -> vector<8x128xf32>
    %111 = arith.addf %109, %110 : vector<8x128xf32>
    %112 = vector.broadcast %3 : vector<1x128xf32> to vector<8x128xf32>
    %113 = arith.addf %111, %112 : vector<8x128xf32>
    %114 = arith.negf %113 : vector<8x128xf32>
    %115 = math.exp %114 : vector<8x128xf32>
    %cst_30 = arith.constant 1.000000e+00 : f32
    %116 = vector.broadcast %cst_30 : f32 to vector<8x128xf32>
    %117 = arith.addf %116, %115 : vector<8x128xf32>
    %118 = arith.divf %116, %117 : vector<8x128xf32>
    %119 = math.tanh %113 : vector<8x128xf32>
    %120 = vector.extract_strided_slice %118 {offsets = [0, 0], sizes = [8, 32], strides = [1, 1]} : vector<8x128xf32> to vector<8x32xf32>
    %121 = vector.extract_strided_slice %118 {offsets = [0, 32], sizes = [8, 32], strides = [1, 1]} : vector<8x128xf32> to vector<8x32xf32>
    %122 = vector.extract_strided_slice %119 {offsets = [0, 64], sizes = [8, 32], strides = [1, 1]} : vector<8x128xf32> to vector<8x32xf32>
    %123 = vector.extract_strided_slice %118 {offsets = [0, 96], sizes = [8, 32], strides = [1, 1]} : vector<8x128xf32> to vector<8x32xf32>
    %124 = arith.mulf %121, %84 : vector<8x32xf32>
    %125 = arith.mulf %120, %122 : vector<8x32xf32>
    %126 = arith.addf %124, %125 : vector<8x32xf32>
    %127 = math.tanh %126 : vector<8x32xf32>
    %128 = arith.mulf %123, %127 : vector<8x32xf32>
    %c2_i32 = arith.constant 2 : i32
    %129 = vector.broadcast %c2_i32 : i32 to vector<8x32xi32>
    %130 = arith.cmpi sgt, %4, %129 : vector<8x32xi32>
    %131 = arith.select %130, %128, %89 : vector<8x32xi1>, vector<8x32xf32>
    %cst_31 = arith.constant dense<0.000000e+00> : vector<8x128xf32>
    %132 = tpu.matmul %108, %0, %cst_31 {dimension_numbers = #tpu.dot_dimension_numbers<[1], [0], [0], [1], [0, 0, 1, 1], [], []>} : vector<8x32xf32>, vector<32x128xf32>, vector<8x128xf32> -> vector<8x128xf32>
    %c3 = arith.constant 3 : index
    %c0_32 = arith.constant 0 : index
    %c0_33 = arith.constant 0 : index
    %133 = vector.load %arg0[%c3, %c0_32, %c0_33] : memref<8x8x128xf32, #tpu.memory_space<vmem>>, vector<1x8x128xf32>
    %134 = vector.shape_cast %133 : vector<1x8x128xf32> to vector<8x128xf32>
    %135 = arith.addf %132, %134 : vector<8x128xf32>
    %136 = arith.negf %135 : vector<8x128xf32>
    %137 = math.exp %136 : vector<8x128xf32>
    %cst_34 = arith.constant 1.000000e+00 : f32
    %138 = vector.broadcast %cst_34 : f32 to vector<8x128xf32>
    %139 = arith.addf %138, %137 : vector<8x128xf32>
    %140 = arith.divf %138, %139 : vector<8x128xf32>
    %141 = math.tanh %135 : vector<8x128xf32>
    %142 = vector.extract_strided_slice %140 {offsets = [0, 0], sizes = [8, 32], strides = [1, 1]} : vector<8x128xf32> to vector<8x32xf32>
    %143 = vector.extract_strided_slice %140 {offsets = [0, 32], sizes = [8, 32], strides = [1, 1]} : vector<8x128xf32> to vector<8x32xf32>
    %144 = vector.extract_strided_slice %141 {offsets = [0, 64], sizes = [8, 32], strides = [1, 1]} : vector<8x128xf32> to vector<8x32xf32>
    %145 = vector.extract_strided_slice %140 {offsets = [0, 96], sizes = [8, 32], strides = [1, 1]} : vector<8x128xf32> to vector<8x32xf32>
    %146 = arith.mulf %143, %106 : vector<8x32xf32>
    %147 = arith.mulf %142, %144 : vector<8x32xf32>
    %148 = arith.addf %146, %147 : vector<8x32xf32>
    %149 = math.tanh %148 : vector<8x32xf32>
    %150 = arith.mulf %145, %149 : vector<8x32xf32>
    %cst_35 = arith.constant dense<0.000000e+00> : vector<8x128xf32>
    %151 = tpu.matmul %150, %1, %cst_35 {dimension_numbers = #tpu.dot_dimension_numbers<[1], [0], [0], [1], [0, 0, 1, 1], [], []>} : vector<8x32xf32>, vector<32x128xf32>, vector<8x128xf32> -> vector<8x128xf32>
    %cst_36 = arith.constant dense<0.000000e+00> : vector<8x128xf32>
    %152 = tpu.matmul %131, %2, %cst_36 {dimension_numbers = #tpu.dot_dimension_numbers<[1], [0], [0], [1], [0, 0, 1, 1], [], []>} : vector<8x32xf32>, vector<32x128xf32>, vector<8x128xf32> -> vector<8x128xf32>
    %153 = arith.addf %151, %152 : vector<8x128xf32>
    %154 = vector.broadcast %3 : vector<1x128xf32> to vector<8x128xf32>
    %155 = arith.addf %153, %154 : vector<8x128xf32>
    %156 = arith.negf %155 : vector<8x128xf32>
    %157 = math.exp %156 : vector<8x128xf32>
    %cst_37 = arith.constant 1.000000e+00 : f32
    %158 = vector.broadcast %cst_37 : f32 to vector<8x128xf32>
    %159 = arith.addf %158, %157 : vector<8x128xf32>
    %160 = arith.divf %158, %159 : vector<8x128xf32>
    %161 = math.tanh %155 : vector<8x128xf32>
    %162 = vector.extract_strided_slice %160 {offsets = [0, 0], sizes = [8, 32], strides = [1, 1]} : vector<8x128xf32> to vector<8x32xf32>
    %163 = vector.extract_strided_slice %160 {offsets = [0, 32], sizes = [8, 32], strides = [1, 1]} : vector<8x128xf32> to vector<8x32xf32>
    %164 = vector.extract_strided_slice %161 {offsets = [0, 64], sizes = [8, 32], strides = [1, 1]} : vector<8x128xf32> to vector<8x32xf32>
    %165 = vector.extract_strided_slice %160 {offsets = [0, 96], sizes = [8, 32], strides = [1, 1]} : vector<8x128xf32> to vector<8x32xf32>
    %166 = arith.mulf %163, %126 : vector<8x32xf32>
    %167 = arith.mulf %162, %164 : vector<8x32xf32>
    %168 = arith.addf %166, %167 : vector<8x32xf32>
    %169 = math.tanh %168 : vector<8x32xf32>
    %170 = arith.mulf %165, %169 : vector<8x32xf32>
    %c3_i32 = arith.constant 3 : i32
    %171 = vector.broadcast %c3_i32 : i32 to vector<8x32xi32>
    %172 = arith.cmpi sgt, %4, %171 : vector<8x32xi32>
    %173 = arith.select %172, %170, %131 : vector<8x32xi1>, vector<8x32xf32>
    %cst_38 = arith.constant dense<0.000000e+00> : vector<8x128xf32>
    %174 = tpu.matmul %150, %0, %cst_38 {dimension_numbers = #tpu.dot_dimension_numbers<[1], [0], [0], [1], [0, 0, 1, 1], [], []>} : vector<8x32xf32>, vector<32x128xf32>, vector<8x128xf32> -> vector<8x128xf32>
    %c4 = arith.constant 4 : index
    %c0_39 = arith.constant 0 : index
    %c0_40 = arith.constant 0 : index
    %175 = vector.load %arg0[%c4, %c0_39, %c0_40] : memref<8x8x128xf32, #tpu.memory_space<vmem>>, vector<1x8x128xf32>
    %176 = vector.shape_cast %175 : vector<1x8x128xf32> to vector<8x128xf32>
    %177 = arith.addf %174, %176 : vector<8x128xf32>
    %178 = arith.negf %177 : vector<8x128xf32>
    %179 = math.exp %178 : vector<8x128xf32>
    %cst_41 = arith.constant 1.000000e+00 : f32
    %180 = vector.broadcast %cst_41 : f32 to vector<8x128xf32>
    %181 = arith.addf %180, %179 : vector<8x128xf32>
    %182 = arith.divf %180, %181 : vector<8x128xf32>
    %183 = math.tanh %177 : vector<8x128xf32>
    %184 = vector.extract_strided_slice %182 {offsets = [0, 0], sizes = [8, 32], strides = [1, 1]} : vector<8x128xf32> to vector<8x32xf32>
    %185 = vector.extract_strided_slice %182 {offsets = [0, 32], sizes = [8, 32], strides = [1, 1]} : vector<8x128xf32> to vector<8x32xf32>
    %186 = vector.extract_strided_slice %183 {offsets = [0, 64], sizes = [8, 32], strides = [1, 1]} : vector<8x128xf32> to vector<8x32xf32>
    %187 = vector.extract_strided_slice %182 {offsets = [0, 96], sizes = [8, 32], strides = [1, 1]} : vector<8x128xf32> to vector<8x32xf32>
    %188 = arith.mulf %185, %148 : vector<8x32xf32>
    %189 = arith.mulf %184, %186 : vector<8x32xf32>
    %190 = arith.addf %188, %189 : vector<8x32xf32>
    %191 = math.tanh %190 : vector<8x32xf32>
    %192 = arith.mulf %187, %191 : vector<8x32xf32>
    %cst_42 = arith.constant dense<0.000000e+00> : vector<8x128xf32>
    %193 = tpu.matmul %192, %1, %cst_42 {dimension_numbers = #tpu.dot_dimension_numbers<[1], [0], [0], [1], [0, 0, 1, 1], [], []>} : vector<8x32xf32>, vector<32x128xf32>, vector<8x128xf32> -> vector<8x128xf32>
    %cst_43 = arith.constant dense<0.000000e+00> : vector<8x128xf32>
    %194 = tpu.matmul %173, %2, %cst_43 {dimension_numbers = #tpu.dot_dimension_numbers<[1], [0], [0], [1], [0, 0, 1, 1], [], []>} : vector<8x32xf32>, vector<32x128xf32>, vector<8x128xf32> -> vector<8x128xf32>
    %195 = arith.addf %193, %194 : vector<8x128xf32>
    %196 = vector.broadcast %3 : vector<1x128xf32> to vector<8x128xf32>
    %197 = arith.addf %195, %196 : vector<8x128xf32>
    %198 = arith.negf %197 : vector<8x128xf32>
    %199 = math.exp %198 : vector<8x128xf32>
    %cst_44 = arith.constant 1.000000e+00 : f32
    %200 = vector.broadcast %cst_44 : f32 to vector<8x128xf32>
    %201 = arith.addf %200, %199 : vector<8x128xf32>
    %202 = arith.divf %200, %201 : vector<8x128xf32>
    %203 = math.tanh %197 : vector<8x128xf32>
    %204 = vector.extract_strided_slice %202 {offsets = [0, 0], sizes = [8, 32], strides = [1, 1]} : vector<8x128xf32> to vector<8x32xf32>
    %205 = vector.extract_strided_slice %202 {offsets = [0, 32], sizes = [8, 32], strides = [1, 1]} : vector<8x128xf32> to vector<8x32xf32>
    %206 = vector.extract_strided_slice %203 {offsets = [0, 64], sizes = [8, 32], strides = [1, 1]} : vector<8x128xf32> to vector<8x32xf32>
    %207 = vector.extract_strided_slice %202 {offsets = [0, 96], sizes = [8, 32], strides = [1, 1]} : vector<8x128xf32> to vector<8x32xf32>
    %208 = arith.mulf %205, %168 : vector<8x32xf32>
    %209 = arith.mulf %204, %206 : vector<8x32xf32>
    %210 = arith.addf %208, %209 : vector<8x32xf32>
    %211 = math.tanh %210 : vector<8x32xf32>
    %212 = arith.mulf %207, %211 : vector<8x32xf32>
    %c4_i32 = arith.constant 4 : i32
    %213 = vector.broadcast %c4_i32 : i32 to vector<8x32xi32>
    %214 = arith.cmpi sgt, %4, %213 : vector<8x32xi32>
    %215 = arith.select %214, %212, %173 : vector<8x32xi1>, vector<8x32xf32>
    %cst_45 = arith.constant dense<0.000000e+00> : vector<8x128xf32>
    %216 = tpu.matmul %192, %0, %cst_45 {dimension_numbers = #tpu.dot_dimension_numbers<[1], [0], [0], [1], [0, 0, 1, 1], [], []>} : vector<8x32xf32>, vector<32x128xf32>, vector<8x128xf32> -> vector<8x128xf32>
    %c5 = arith.constant 5 : index
    %c0_46 = arith.constant 0 : index
    %c0_47 = arith.constant 0 : index
    %217 = vector.load %arg0[%c5, %c0_46, %c0_47] : memref<8x8x128xf32, #tpu.memory_space<vmem>>, vector<1x8x128xf32>
    %218 = vector.shape_cast %217 : vector<1x8x128xf32> to vector<8x128xf32>
    %219 = arith.addf %216, %218 : vector<8x128xf32>
    %220 = arith.negf %219 : vector<8x128xf32>
    %221 = math.exp %220 : vector<8x128xf32>
    %cst_48 = arith.constant 1.000000e+00 : f32
    %222 = vector.broadcast %cst_48 : f32 to vector<8x128xf32>
    %223 = arith.addf %222, %221 : vector<8x128xf32>
    %224 = arith.divf %222, %223 : vector<8x128xf32>
    %225 = math.tanh %219 : vector<8x128xf32>
    %226 = vector.extract_strided_slice %224 {offsets = [0, 0], sizes = [8, 32], strides = [1, 1]} : vector<8x128xf32> to vector<8x32xf32>
    %227 = vector.extract_strided_slice %224 {offsets = [0, 32], sizes = [8, 32], strides = [1, 1]} : vector<8x128xf32> to vector<8x32xf32>
    %228 = vector.extract_strided_slice %225 {offsets = [0, 64], sizes = [8, 32], strides = [1, 1]} : vector<8x128xf32> to vector<8x32xf32>
    %229 = vector.extract_strided_slice %224 {offsets = [0, 96], sizes = [8, 32], strides = [1, 1]} : vector<8x128xf32> to vector<8x32xf32>
    %230 = arith.mulf %227, %190 : vector<8x32xf32>
    %231 = arith.mulf %226, %228 : vector<8x32xf32>
    %232 = arith.addf %230, %231 : vector<8x32xf32>
    %233 = math.tanh %232 : vector<8x32xf32>
    %234 = arith.mulf %229, %233 : vector<8x32xf32>
    %cst_49 = arith.constant dense<0.000000e+00> : vector<8x128xf32>
    %235 = tpu.matmul %234, %1, %cst_49 {dimension_numbers = #tpu.dot_dimension_numbers<[1], [0], [0], [1], [0, 0, 1, 1], [], []>} : vector<8x32xf32>, vector<32x128xf32>, vector<8x128xf32> -> vector<8x128xf32>
    %cst_50 = arith.constant dense<0.000000e+00> : vector<8x128xf32>
    %236 = tpu.matmul %215, %2, %cst_50 {dimension_numbers = #tpu.dot_dimension_numbers<[1], [0], [0], [1], [0, 0, 1, 1], [], []>} : vector<8x32xf32>, vector<32x128xf32>, vector<8x128xf32> -> vector<8x128xf32>
    %237 = arith.addf %235, %236 : vector<8x128xf32>
    %238 = vector.broadcast %3 : vector<1x128xf32> to vector<8x128xf32>
    %239 = arith.addf %237, %238 : vector<8x128xf32>
    %240 = arith.negf %239 : vector<8x128xf32>
    %241 = math.exp %240 : vector<8x128xf32>
    %cst_51 = arith.constant 1.000000e+00 : f32
    %242 = vector.broadcast %cst_51 : f32 to vector<8x128xf32>
    %243 = arith.addf %242, %241 : vector<8x128xf32>
    %244 = arith.divf %242, %243 : vector<8x128xf32>
    %245 = math.tanh %239 : vector<8x128xf32>
    %246 = vector.extract_strided_slice %244 {offsets = [0, 0], sizes = [8, 32], strides = [1, 1]} : vector<8x128xf32> to vector<8x32xf32>
    %247 = vector.extract_strided_slice %244 {offsets = [0, 32], sizes = [8, 32], strides = [1, 1]} : vector<8x128xf32> to vector<8x32xf32>
    %248 = vector.extract_strided_slice %245 {offsets = [0, 64], sizes = [8, 32], strides = [1, 1]} : vector<8x128xf32> to vector<8x32xf32>
    %249 = vector.extract_strided_slice %244 {offsets = [0, 96], sizes = [8, 32], strides = [1, 1]} : vector<8x128xf32> to vector<8x32xf32>
    %250 = arith.mulf %247, %210 : vector<8x32xf32>
    %251 = arith.mulf %246, %248 : vector<8x32xf32>
    %252 = arith.addf %250, %251 : vector<8x32xf32>
    %253 = math.tanh %252 : vector<8x32xf32>
    %254 = arith.mulf %249, %253 : vector<8x32xf32>
    %c5_i32 = arith.constant 5 : i32
    %255 = vector.broadcast %c5_i32 : i32 to vector<8x32xi32>
    %256 = arith.cmpi sgt, %4, %255 : vector<8x32xi32>
    %257 = arith.select %256, %254, %215 : vector<8x32xi1>, vector<8x32xf32>
    %cst_52 = arith.constant dense<0.000000e+00> : vector<8x128xf32>
    %258 = tpu.matmul %234, %0, %cst_52 {dimension_numbers = #tpu.dot_dimension_numbers<[1], [0], [0], [1], [0, 0, 1, 1], [], []>} : vector<8x32xf32>, vector<32x128xf32>, vector<8x128xf32> -> vector<8x128xf32>
    %c6 = arith.constant 6 : index
    %c0_53 = arith.constant 0 : index
    %c0_54 = arith.constant 0 : index
    %259 = vector.load %arg0[%c6, %c0_53, %c0_54] : memref<8x8x128xf32, #tpu.memory_space<vmem>>, vector<1x8x128xf32>
    %260 = vector.shape_cast %259 : vector<1x8x128xf32> to vector<8x128xf32>
    %261 = arith.addf %258, %260 : vector<8x128xf32>
    %262 = arith.negf %261 : vector<8x128xf32>
    %263 = math.exp %262 : vector<8x128xf32>
    %cst_55 = arith.constant 1.000000e+00 : f32
    %264 = vector.broadcast %cst_55 : f32 to vector<8x128xf32>
    %265 = arith.addf %264, %263 : vector<8x128xf32>
    %266 = arith.divf %264, %265 : vector<8x128xf32>
    %267 = math.tanh %261 : vector<8x128xf32>
    %268 = vector.extract_strided_slice %266 {offsets = [0, 0], sizes = [8, 32], strides = [1, 1]} : vector<8x128xf32> to vector<8x32xf32>
    %269 = vector.extract_strided_slice %266 {offsets = [0, 32], sizes = [8, 32], strides = [1, 1]} : vector<8x128xf32> to vector<8x32xf32>
    %270 = vector.extract_strided_slice %267 {offsets = [0, 64], sizes = [8, 32], strides = [1, 1]} : vector<8x128xf32> to vector<8x32xf32>
    %271 = vector.extract_strided_slice %266 {offsets = [0, 96], sizes = [8, 32], strides = [1, 1]} : vector<8x128xf32> to vector<8x32xf32>
    %272 = arith.mulf %269, %232 : vector<8x32xf32>
    %273 = arith.mulf %268, %270 : vector<8x32xf32>
    %274 = arith.addf %272, %273 : vector<8x32xf32>
    %275 = math.tanh %274 : vector<8x32xf32>
    %276 = arith.mulf %271, %275 : vector<8x32xf32>
    %cst_56 = arith.constant dense<0.000000e+00> : vector<8x128xf32>
    %277 = tpu.matmul %276, %1, %cst_56 {dimension_numbers = #tpu.dot_dimension_numbers<[1], [0], [0], [1], [0, 0, 1, 1], [], []>} : vector<8x32xf32>, vector<32x128xf32>, vector<8x128xf32> -> vector<8x128xf32>
    %cst_57 = arith.constant dense<0.000000e+00> : vector<8x128xf32>
    %278 = tpu.matmul %257, %2, %cst_57 {dimension_numbers = #tpu.dot_dimension_numbers<[1], [0], [0], [1], [0, 0, 1, 1], [], []>} : vector<8x32xf32>, vector<32x128xf32>, vector<8x128xf32> -> vector<8x128xf32>
    %279 = arith.addf %277, %278 : vector<8x128xf32>
    %280 = vector.broadcast %3 : vector<1x128xf32> to vector<8x128xf32>
    %281 = arith.addf %279, %280 : vector<8x128xf32>
    %282 = arith.negf %281 : vector<8x128xf32>
    %283 = math.exp %282 : vector<8x128xf32>
    %cst_58 = arith.constant 1.000000e+00 : f32
    %284 = vector.broadcast %cst_58 : f32 to vector<8x128xf32>
    %285 = arith.addf %284, %283 : vector<8x128xf32>
    %286 = arith.divf %284, %285 : vector<8x128xf32>
    %287 = math.tanh %281 : vector<8x128xf32>
    %288 = vector.extract_strided_slice %286 {offsets = [0, 0], sizes = [8, 32], strides = [1, 1]} : vector<8x128xf32> to vector<8x32xf32>
    %289 = vector.extract_strided_slice %286 {offsets = [0, 32], sizes = [8, 32], strides = [1, 1]} : vector<8x128xf32> to vector<8x32xf32>
    %290 = vector.extract_strided_slice %287 {offsets = [0, 64], sizes = [8, 32], strides = [1, 1]} : vector<8x128xf32> to vector<8x32xf32>
    %291 = vector.extract_strided_slice %286 {offsets = [0, 96], sizes = [8, 32], strides = [1, 1]} : vector<8x128xf32> to vector<8x32xf32>
    %292 = arith.mulf %289, %252 : vector<8x32xf32>
    %293 = arith.mulf %288, %290 : vector<8x32xf32>
    %294 = arith.addf %292, %293 : vector<8x32xf32>
    %295 = math.tanh %294 : vector<8x32xf32>
    %296 = arith.mulf %291, %295 : vector<8x32xf32>
    %c6_i32 = arith.constant 6 : i32
    %297 = vector.broadcast %c6_i32 : i32 to vector<8x32xi32>
    %298 = arith.cmpi sgt, %4, %297 : vector<8x32xi32>
    %299 = arith.select %298, %296, %257 : vector<8x32xi1>, vector<8x32xf32>
    %cst_59 = arith.constant dense<0.000000e+00> : vector<8x128xf32>
    %300 = tpu.matmul %276, %0, %cst_59 {dimension_numbers = #tpu.dot_dimension_numbers<[1], [0], [0], [1], [0, 0, 1, 1], [], []>} : vector<8x32xf32>, vector<32x128xf32>, vector<8x128xf32> -> vector<8x128xf32>
    %c7 = arith.constant 7 : index
    %c0_60 = arith.constant 0 : index
    %c0_61 = arith.constant 0 : index
    %301 = vector.load %arg0[%c7, %c0_60, %c0_61] : memref<8x8x128xf32, #tpu.memory_space<vmem>>, vector<1x8x128xf32>
    %302 = vector.shape_cast %301 : vector<1x8x128xf32> to vector<8x128xf32>
    %303 = arith.addf %300, %302 : vector<8x128xf32>
    %304 = arith.negf %303 : vector<8x128xf32>
    %305 = math.exp %304 : vector<8x128xf32>
    %cst_62 = arith.constant 1.000000e+00 : f32
    %306 = vector.broadcast %cst_62 : f32 to vector<8x128xf32>
    %307 = arith.addf %306, %305 : vector<8x128xf32>
    %308 = arith.divf %306, %307 : vector<8x128xf32>
    %309 = math.tanh %303 : vector<8x128xf32>
    %310 = vector.extract_strided_slice %308 {offsets = [0, 0], sizes = [8, 32], strides = [1, 1]} : vector<8x128xf32> to vector<8x32xf32>
    %311 = vector.extract_strided_slice %308 {offsets = [0, 32], sizes = [8, 32], strides = [1, 1]} : vector<8x128xf32> to vector<8x32xf32>
    %312 = vector.extract_strided_slice %309 {offsets = [0, 64], sizes = [8, 32], strides = [1, 1]} : vector<8x128xf32> to vector<8x32xf32>
    %313 = vector.extract_strided_slice %308 {offsets = [0, 96], sizes = [8, 32], strides = [1, 1]} : vector<8x128xf32> to vector<8x32xf32>
    %314 = arith.mulf %311, %274 : vector<8x32xf32>
    %315 = arith.mulf %310, %312 : vector<8x32xf32>
    %316 = arith.addf %314, %315 : vector<8x32xf32>
    %317 = math.tanh %316 : vector<8x32xf32>
    %318 = arith.mulf %313, %317 : vector<8x32xf32>
    %cst_63 = arith.constant dense<0.000000e+00> : vector<8x128xf32>
    %319 = tpu.matmul %318, %1, %cst_63 {dimension_numbers = #tpu.dot_dimension_numbers<[1], [0], [0], [1], [0, 0, 1, 1], [], []>} : vector<8x32xf32>, vector<32x128xf32>, vector<8x128xf32> -> vector<8x128xf32>
    %cst_64 = arith.constant dense<0.000000e+00> : vector<8x128xf32>
    %320 = tpu.matmul %299, %2, %cst_64 {dimension_numbers = #tpu.dot_dimension_numbers<[1], [0], [0], [1], [0, 0, 1, 1], [], []>} : vector<8x32xf32>, vector<32x128xf32>, vector<8x128xf32> -> vector<8x128xf32>
    %321 = arith.addf %319, %320 : vector<8x128xf32>
    %322 = vector.broadcast %3 : vector<1x128xf32> to vector<8x128xf32>
    %323 = arith.addf %321, %322 : vector<8x128xf32>
    %324 = arith.negf %323 : vector<8x128xf32>
    %325 = math.exp %324 : vector<8x128xf32>
    %cst_65 = arith.constant 1.000000e+00 : f32
    %326 = vector.broadcast %cst_65 : f32 to vector<8x128xf32>
    %327 = arith.addf %326, %325 : vector<8x128xf32>
    %328 = arith.divf %326, %327 : vector<8x128xf32>
    %329 = math.tanh %323 : vector<8x128xf32>
    %330 = vector.extract_strided_slice %328 {offsets = [0, 0], sizes = [8, 32], strides = [1, 1]} : vector<8x128xf32> to vector<8x32xf32>
    %331 = vector.extract_strided_slice %328 {offsets = [0, 32], sizes = [8, 32], strides = [1, 1]} : vector<8x128xf32> to vector<8x32xf32>
    %332 = vector.extract_strided_slice %329 {offsets = [0, 64], sizes = [8, 32], strides = [1, 1]} : vector<8x128xf32> to vector<8x32xf32>
    %333 = vector.extract_strided_slice %328 {offsets = [0, 96], sizes = [8, 32], strides = [1, 1]} : vector<8x128xf32> to vector<8x32xf32>
    %334 = arith.mulf %331, %294 : vector<8x32xf32>
    %335 = arith.mulf %330, %332 : vector<8x32xf32>
    %336 = arith.addf %334, %335 : vector<8x32xf32>
    %337 = math.tanh %336 : vector<8x32xf32>
    %338 = arith.mulf %333, %337 : vector<8x32xf32>
    %c7_i32 = arith.constant 7 : i32
    %339 = vector.broadcast %c7_i32 : i32 to vector<8x32xi32>
    %340 = arith.cmpi sgt, %4, %339 : vector<8x32xi32>
    %341 = arith.select %340, %338, %299 : vector<8x32xi1>, vector<8x32xf32>
    %c0_66 = arith.constant 0 : index
    %c0_67 = arith.constant 0 : index
    %342 = vector.load %arg6[%c0_66, %c0_67] : memref<32x128xf32, #tpu.memory_space<vmem>>, vector<32x128xf32>
    %cst_68 = arith.constant dense<0.000000e+00> : vector<8x128xf32>
    %343 = tpu.matmul %341, %342, %cst_68 {dimension_numbers = #tpu.dot_dimension_numbers<[1], [0], [0], [1], [0, 0, 1, 1], [], []>} : vector<8x32xf32>, vector<32x128xf32>, vector<8x128xf32> -> vector<8x128xf32>
    %c0_69 = arith.constant 0 : index
    %c0_70 = arith.constant 0 : index
    %344 = vector.load %arg7[%c0_69, %c0_70] : memref<1x128xf32, #tpu.memory_space<vmem>>, vector<1x128xf32>
    %345 = vector.broadcast %344 : vector<1x128xf32> to vector<8x128xf32>
    %346 = arith.addf %343, %345 : vector<8x128xf32>
    %c0_71 = arith.constant 0 : index
    %c0_72 = arith.constant 0 : index
    %347 = vector.load %arg8[%c0_71, %c0_72] : memref<8x128xf32, #tpu.memory_space<vmem>>, vector<8x128xf32>
    tpu.vector_store %arg8[%c0_71, %c0_72], %346 {strides = array<i32>} : memref<8x128xf32, #tpu.memory_space<vmem>>, vector<8x128xf32>,
    return
  }
}

</mosaic_0001>

<llo_original>
// kernel: lstm_forward.1
$region0: #{lstm_forward.1}
  #allocation0 [shape = 'u32[]', space=smem, size = 0x4, offset = 0x4, fixed_abs, tag = 'smem constant byte address 0x4 - core index']
  #allocation1 [shape = 'u32[144,128]{1,0:T(1,128)}', space=vmem, size = 0x12000, scoped, tag = 'internal scratch']
  %s0 = inlined_call_operand.vmem [shape: f32[8,8,128], index: 0, kind: input, shape index: {}]
  %s1 = inlined_call_operand.vmem [shape: s32[8,32], index: 1, kind: input, shape index: {}]
  %s2 = inlined_call_operand.vmem [shape: f32[32,128], index: 2, kind: input, shape index: {}]
  %s3 = inlined_call_operand.vmem [shape: f32[32,128], index: 3, kind: input, shape index: {}]
  %s4 = inlined_call_operand.vmem [shape: f32[32,128], index: 4, kind: input, shape index: {}]
  %s5 = inlined_call_operand.vmem [shape: f32[1,128], index: 5, kind: input, shape index: {}]
  %s6 = inlined_call_operand.vmem [shape: f32[32,128], index: 6, kind: input, shape index: {}]
  %s7 = inlined_call_operand.vmem [shape: f32[1,128], index: 7, kind: input, shape index: {}]
  %s8 = inlined_call_operand.vmem [shape: f32[8,128], index: 8, kind: output, shape index: {}]
  %s9 = sld [smem:[#allocation0]]
  $region42: #{lstm_forward.1} parent=0
    _
  %s11 = ssub.s32 1, %s9
  %s12 = scalar_select 0, %s11, %s9
  // Predicated region
  $region2: #{lstm_forward.1} parent=0 // pred_check
    _
  $region3: #{lstm_forward.1} parent=0 // pred_check_branch
    %14 = sbr.rel (0) target = $region5
  $region4: #{lstm_forward.1} parent=0 // pred_region
    _
  $region5: #{lstm_forward.1} parent=0 // pred_fallthru
    _
  // Predicated region
  $region6: #{lstm_forward.1} parent=0 // pred_check
    _
  $region7: #{lstm_forward.1} parent=0 // pred_check_branch
    %16 = sbr.rel (0) target = $region9
  $region8: #{lstm_forward.1} parent=0 // pred_region
    _
  $region9: #{lstm_forward.1} parent=0 // pred_fallthru
    _
  // Predicated region
  $region10: #{lstm_forward.1} parent=0 // pred_check
    _
  $region11: #{lstm_forward.1} parent=0 // pred_check_branch
    %18 = sbr.rel (0) target = $region13
  $region12: #{lstm_forward.1} parent=0 // pred_region
    _
  $region13: #{lstm_forward.1} parent=0 // pred_fallthru
    _
  // Predicated region
  $region14: #{lstm_forward.1} parent=0 // pred_check
    _
  $region15: #{lstm_forward.1} parent=0 // pred_check_branch
    %20 = sbr.rel (0) target = $region17
  $region16: #{lstm_forward.1} parent=0 // pred_region
    _
  $region17: #{lstm_forward.1} parent=0 // pred_fallthru
    _
  // Predicated region
  $region18: #{lstm_forward.1} parent=0 // pred_check
    _
  $region19: #{lstm_forward.1} parent=0 // pred_check_branch
    %22 = sbr.rel (0) target = $region21
  $region20: #{lstm_forward.1} parent=0 // pred_region
    _
  $region21: #{lstm_forward.1} parent=0 // pred_fallthru
    _
  // Predicated region
  $region22: #{lstm_forward.1} parent=0 // pred_check
    _
  $region23: #{lstm_forward.1} parent=0 // pred_check_branch
    %24 = sbr.rel (0) target = $region25
  $region24: #{lstm_forward.1} parent=0 // pred_region
    _
  $region25: #{lstm_forward.1} parent=0 // pred_fallthru
    _
  // Predicated region
  $region26: #{lstm_forward.1} parent=0 // pred_check
    _
  $region27: #{lstm_forward.1} parent=0 // pred_check_branch
    %26 = sbr.rel (0) target = $region29
  $region28: #{lstm_forward.1} parent=0 // pred_region
    _
  $region29: #{lstm_forward.1} parent=0 // pred_fallthru
    _
  // Predicated region
  $region30: #{lstm_forward.1} parent=0 // pred_check
    _
  $region31: #{lstm_forward.1} parent=0 // pred_check_branch
    %28 = sbr.rel (0) target = $region33
  $region32: #{lstm_forward.1} parent=0 // pred_region
    _
  $region33: #{lstm_forward.1} parent=0 // pred_fallthru
    _
  %v29 = vld [vmem:[%s2] sm:$0xff]
  %v30 = vld [vmem:[%s2 + $0x8] sm:$0xff]
  %v31 = vld [vmem:[%s2 + $0x10] sm:$0xff]
  %v32 = vld [vmem:[%s2 + $0x18] sm:$0xff]
  %v33 = vld [vmem:[%s3] sm:$0xff]
  %v34 = vld [vmem:[%s3 + $0x8] sm:$0xff]
  %v35 = vld [vmem:[%s3 + $0x10] sm:$0xff]
  %v36 = vld [vmem:[%s3 + $0x18] sm:$0xff]
  %v37 = vld [vmem:[%s4] sm:$0xff]
  %v38 = vld [vmem:[%s4 + $0x8] sm:$0xff]
  %v39 = vld [vmem:[%s4 + $0x10] sm:$0xff]
  %v40 = vld [vmem:[%s4 + $0x18] sm:$0xff]
  %v41 = vld [vmem:[%s5] sm:$0x1]
  %v42 = vld [vmem:[%s1] sm:$0xff]
  %v43 = vld [vmem:[%s0] sm:$0xff]
  %vm44 = vcmask 261120
  %v46 = vsel %vm44, 0.0, 0
  %48 = vmatprep.subr.mxu0 0.0
  %49 = vmatpush1.msra.mxu0 %v29
  %50 = vmatprep.subr.mxu0 0.0
  %51 = vmatpush1.msra.mxu0 %v30
  %52 = vmatprep.subr.mxu0 0.0
  %53 = vmatpush1.msra.mxu0 %v31
  %54 = vmatprep.subr.mxu0 0.0
  %55 = vmatpush1.msra.mxu0 %v32
  %56 = vmatprep.subr.mxu0 0.0
  %57 = vmatpush1.msra.mxu0 0.0
  %58 = vmatprep.subr.mxu0 0.0
  %59 = vmatpush1.msra.mxu0 0.0
  %60 = vmatprep.subr.mxu0 0.0
  %61 = vmatpush1.msra.mxu0 0.0
  %62 = vmatprep.subr.mxu0 0.0
  %63 = vmatpush1.msra.mxu0 0.0
  %64 = vmatprep.subr.mxu0 0.0
  %65 = vmatpush1.msra.mxu0 0.0
  %66 = vmatprep.subr.mxu0 0.0
  %67 = vmatpush1.msra.mxu0 0.0
  %68 = vmatprep.subr.mxu0 0.0
  %69 = vmatpush1.msra.mxu0 0.0
  %70 = vmatprep.subr.mxu0 0.0
  %71 = vmatpush1.msra.mxu0 0.0
  %72 = vmatprep.subr.mxu0 0.0
  %73 = vmatpush1.msra.mxu0 0.0
  %74 = vmatprep.subr.mxu0 0.0
  %75 = vmatpush1.msra.mxu0 0.0
  %76 = vmatprep.subr.mxu0 0.0
  %77 = vmatpush1.msra.mxu0 0.0
  %78 = vmatprep.subr.mxu0 0.0
  %79 = vmatpush1.msra.mxu0 0.0
  %80 = vmatprep.subr.mxu0 0.0
  %81 = vmatpush1.msra.mxu0 0.0
  %82 = vmatprep.subr.mxu0 0.0
  %83 = vmatpush1.msra.mxu0 0.0
  %84 = vmatprep.subr.mxu0 0.0
  %85 = vmatpush1.msra.mxu0 0.0
  %86 = vmatprep.subr.mxu0 0.0
  %87 = vmatpush1.msra.mxu0 0.0
  %88 = vmatprep.subr.mxu0 0.0
  %89 = vmatpush1.msra.mxu0 0.0
  %90 = vmatprep.subr.mxu0 0.0
  %91 = vmatpush1.msra.mxu0 0.0
  %92 = vmatprep.subr.mxu0 0.0
  %93 = vmatpush1.msra.mxu0 0.0
  %94 = vmatprep.subr.mxu0 0.0
  %95 = vmatpush1.msra.mxu0 0.0
  %96 = vmatprep.subr.mxu0 0.0
  %97 = vmatpush1.msra.mxu0 0.0
  %98 = vmatprep.subr.mxu0 0.0
  %99 = vmatpush1.msra.mxu0 0.0
  %100 = vmatprep.subr.mxu0 0.0
  %101 = vmatpush1.msra.mxu0 0.0
  %102 = vmatprep.subr.mxu0 0.0
  %103 = vmatpush1.msra.mxu0 0.0
  %104 = vmatprep.subr.mxu0 0.0
  %105 = vmatpush1.msra.mxu0 0.0
  %106 = vmatprep.subr.mxu0 0.0
  %107 = vmatpush1.msra.mxu0 0.0
  %108 = vmatprep.subr.mxu0 0.0
  %109 = vmatpush1.msra.mxu0 0.0
  %110 = vmatprep.subr.mxu0 0.0
  %111 = vmatpush1.msra.mxu0 0.0
  %112 = vmatprep.mubr.f32.mxu0 0.0
  %113 = vmatmul.mubr.f32.gmra.mrb[0].mxu0 %v46
  %v114 = vpop.f32.mrb[0].mxu0
  %v115 = vadd.f32 %v43, %v114
  %v116 = vpop.f32.mrb[0].mxu0
  %117 = vdwg.mxu0
  %v118 = vxor.u32 %v115, 2147483648
  %v119 = vmul.f32 %v118, 1.442695
  %v120 = vpow.pop %v119
  %v121 = vadd.f32 %v120, 1.0
  %v122 = vrcp.pop %v121
  %v123 = vmul.f32 1.0, %v122
  %v124 = vtanh.pop %v115
  %v125 = vmul.f32 %v123, 0.0
  %127 = vrot.lane.b32.xlu0 %v124, 64
  %v128 = vpop.permute.xlu0 %127
  %v130 = vmul.f32 %v123, %v128
  %132 = vrot.lane.b32.xlu0 %v130, 32
  %v133 = vpop.permute.xlu0 %132
  %v135 = vadd.f32 %v125, %v133
  %v136 = vtanh.pop %v135
  %138 = vrot.lane.b32.xlu0 %v136, 64
  %v139 = vpop.permute.xlu0 %138
  %v141 = vmul.f32 %v123, %v139
  %142 = vmatprep.subr.mxu0 0.0
  %143 = vmatpush1.msra.mxu0 %v37
  %144 = vmatprep.subr.mxu0 0.0
  %145 = vmatpush1.msra.mxu0 %v38
  %146 = vmatprep.subr.mxu0 0.0
  %147 = vmatpush1.msra.mxu0 %v39
  %148 = vmatprep.subr.mxu0 0.0
  %149 = vmatpush1.msra.mxu0 %v40
  %150 = vmatprep.subr.mxu0 0.0
  %151 = vmatpush1.msra.mxu0 0.0
  %152 = vmatprep.subr.mxu0 0.0
  %153 = vmatpush1.msra.mxu0 0.0
  %154 = vmatprep.subr.mxu0 0.0
  %155 = vmatpush1.msra.mxu0 0.0
  %156 = vmatprep.subr.mxu0 0.0
  %157 = vmatpush1.msra.mxu0 0.0
  %158 = vmatprep.subr.mxu0 0.0
  %159 = vmatpush1.msra.mxu0 0.0
  %160 = vmatprep.subr.mxu0 0.0
  %161 = vmatpush1.msra.mxu0 0.0
  %162 = vmatprep.subr.mxu0 0.0
  %163 = vmatpush1.msra.mxu0 0.0
  %164 = vmatprep.subr.mxu0 0.0
  %165 = vmatpush1.msra.mxu0 0.0
  %166 = vmatprep.subr.mxu0 0.0
  %167 = vmatpush1.msra.mxu0 0.0
  %168 = vmatprep.subr.mxu0 0.0
  %169 = vmatpush1.msra.mxu0 0.0
  %170 = vmatprep.subr.mxu0 0.0
  %171 = vmatpush1.msra.mxu0 0.0
  %172 = vmatprep.subr.mxu0 0.0
  %173 = vmatpush1.msra.mxu0 0.0
  %174 = vmatprep.subr.mxu0 0.0
  %175 = vmatpush1.msra.mxu0 0.0
  %176 = vmatprep.subr.mxu0 0.0
  %177 = vmatpush1.msra.mxu0 0.0
  %178 = vmatprep.subr.mxu0 0.0
  %179 = vmatpush1.msra.mxu0 0.0
  %180 = vmatprep.subr.mxu0 0.0
  %181 = vmatpush1.msra.mxu0 0.0
  %182 = vmatprep.subr.mxu0 0.0
  %183 = vmatpush1.msra.mxu0 0.0
  %184 = vmatprep.subr.mxu0 0.0
  %185 = vmatpush1.msra.mxu0 0.0
  %186 = vmatprep.subr.mxu0 0.0
  %187 = vmatpush1.msra.mxu0 0.0
  %188 = vmatprep.subr.mxu0 0.0
  %189 = vmatpush1.msra.mxu0 0.0
  %190 = vmatprep.subr.mxu0 0.0
  %191 = vmatpush1.msra.mxu0 0.0
  %192 = vmatprep.subr.mxu0 0.0
  %193 = vmatpush1.msra.mxu0 0.0
  %194 = vmatprep.subr.mxu0 0.0
  %195 = vmatpush1.msra.mxu0 0.0
  %196 = vmatprep.subr.mxu0 0.0
  %197 = vmatpush1.msra.mxu0 0.0
  %198 = vmatprep.subr.mxu0 0.0
  %199 = vmatpush1.msra.mxu0 0.0
  %200 = vmatprep.subr.mxu0 0.0
  %201 = vmatpush1.msra.mxu0 0.0
  %202 = vmatprep.subr.mxu0 0.0
  %203 = vmatpush1.msra.mxu0 0.0
  %204 = vmatprep.subr.mxu0 0.0
  %205 = vmatpush1.msra.mxu0 0.0
  %206 = vmatprep.mubr.f32.mxu0 0.0
  %207 = vmatmul.mubr.f32.gmra.mrb[0].mxu0 %v46
  %v208 = vpop.f32.mrb[0].mxu0
  %v209 = vadd.f32 0.0, %v208
  %v210 = vpop.f32.mrb[0].mxu0
  %211 = vdwg.mxu0
  %213 = vrot.lane.b32.xlu0 %v141, 32
  %v214 = vpop.permute.xlu0 %213
  %v215 = vsel %vm44, %v214, 0
  %217 = vmatprep.subr.mxu0 0.0
  %218 = vmatpush1.msra.mxu0 %v33
  %219 = vmatprep.subr.mxu0 0.0
  %220 = vmatpush1.msra.mxu0 %v34
  %221 = vmatprep.subr.mxu0 0.0
  %222 = vmatpush1.msra.mxu0 %v35
  %223 = vmatprep.subr.mxu0 0.0
  %224 = vmatpush1.msra.mxu0 %v36
  %225 = vmatprep.subr.mxu0 0.0
  %226 = vmatpush1.msra.mxu0 0.0
  %227 = vmatprep.subr.mxu0 0.0
  %228 = vmatpush1.msra.mxu0 0.0
  %229 = vmatprep.subr.mxu0 0.0
  %230 = vmatpush1.msra.mxu0 0.0
  %231 = vmatprep.subr.mxu0 0.0
  %232 = vmatpush1.msra.mxu0 0.0
  %233 = vmatprep.subr.mxu0 0.0
  %234 = vmatpush1.msra.mxu0 0.0
  %235 = vmatprep.subr.mxu0 0.0
  %236 = vmatpush1.msra.mxu0 0.0
  %237 = vmatprep.subr.mxu0 0.0
  %238 = vmatpush1.msra.mxu0 0.0
  %239 = vmatprep.subr.mxu0 0.0
  %240 = vmatpush1.msra.mxu0 0.0
  %241 = vmatprep.subr.mxu0 0.0
  %242 = vmatpush1.msra.mxu0 0.0
  %243 = vmatprep.subr.mxu0 0.0
  %244 = vmatpush1.msra.mxu0 0.0
  %245 = vmatprep.subr.mxu0 0.0
  %246 = vmatpush1.msra.mxu0 0.0
  %247 = vmatprep.subr.mxu0 0.0
  %248 = vmatpush1.msra.mxu0 0.0
  %249 = vmatprep.subr.mxu0 0.0
  %250 = vmatpush1.msra.mxu0 0.0
  %251 = vmatprep.subr.mxu0 0.0
  %252 = vmatpush1.msra.mxu0 0.0
  %253 = vmatprep.subr.mxu0 0.0
  %254 = vmatpush1.msra.mxu0 0.0
  %255 = vmatprep.subr.mxu0 0.0
  %256 = vmatpush1.msra.mxu0 0.0
  %257 = vmatprep.subr.mxu0 0.0
  %258 = vmatpush1.msra.mxu0 0.0
  %259 = vmatprep.subr.mxu0 0.0
  %260 = vmatpush1.msra.mxu0 0.0
  %261 = vmatprep.subr.mxu0 0.0
  %262 = vmatpush1.msra.mxu0 0.0
  %263 = vmatprep.subr.mxu0 0.0
  %264 = vmatpush1.msra.mxu0 0.0
  %265 = vmatprep.subr.mxu0 0.0
  %266 = vmatpush1.msra.mxu0 0.0
  %267 = vmatprep.subr.mxu0 0.0
  %268 = vmatpush1.msra.mxu0 0.0
  %269 = vmatprep.subr.mxu0 0.0
  %270 = vmatpush1.msra.mxu0 0.0
  %271 = vmatprep.subr.mxu0 0.0
  %272 = vmatpush1.msra.mxu0 0.0
  %273 = vmatprep.subr.mxu0 0.0
  %274 = vmatpush1.msra.mxu0 0.0
  %275 = vmatprep.subr.mxu0 0.0
  %276 = vmatpush1.msra.mxu0 0.0
  %277 = vmatprep.subr.mxu0 0.0
  %278 = vmatpush1.msra.mxu0 0.0
  %279 = vmatprep.subr.mxu0 0.0
  %280 = vmatpush1.msra.mxu0 0.0
  %281 = vmatprep.mubr.f32.mxu0 0.0
  %282 = vmatmul.mubr.f32.gmra.mrb[0].mxu0 %v215
  %v283 = vpop.f32.mrb[0].mxu0
  %v284 = vadd.f32 %v209, %v283
  %v285 = vpop.f32.mrb[0].mxu0
  %286 = vdwg.mxu0
  %v288 = vlaneseq
  %v289 = vshrl.u32 %v288, 7
  %v290 = vsub.s32 0, %v289
  %v291 = vrot.slane %v41, %v290
  %v293 = vadd.f32 %v284, %v291
  %v294 = vxor.u32 %v293, 2147483648
  %v295 = vmul.f32 %v294, 1.442695
  %v296 = vpow.pop %v295
  %v297 = vadd.f32 %v296, 1.0
  %v298 = vrcp.pop %v297
  %v299 = vmul.f32 1.0, %v298
  %v300 = vtanh.pop %v293
  %v301 = vmul.f32 %v299, 0.0
  %303 = vrot.lane.b32.xlu0 %v300, 64
  %v304 = vpop.permute.xlu0 %303
  %v306 = vmul.f32 %v299, %v304
  %308 = vrot.lane.b32.xlu0 %v306, 32
  %v309 = vpop.permute.xlu0 %308
  %v311 = vadd.f32 %v301, %v309
  %v312 = vtanh.pop %v311
  %314 = vrot.lane.b32.xlu0 %v312, 64
  %v315 = vpop.permute.xlu0 %314
  %v317 = vmul.f32 %v299, %v315
  %vm318 = vcmp.gt.s32.totalorder %v42, 0
  %320 = vrot.lane.b32.xlu0 %v317, 32
  %v321 = vpop.permute.xlu0 %320
  %v323 = vsel %vm318, %v321, 0.0
  %s324 = scalar_lea.vmem %s0, 8
  %v325 = vld [vmem:[%s324] sm:$0xff]
  %326 = vmatprep.subr.mxu0 0.0
  %327 = vmatpush1.msra.mxu0 %v29
  %328 = vmatprep.subr.mxu0 0.0
  %329 = vmatpush1.msra.mxu0 %v30
  %330 = vmatprep.subr.mxu0 0.0
  %331 = vmatpush1.msra.mxu0 %v31
  %332 = vmatprep.subr.mxu0 0.0
  %333 = vmatpush1.msra.mxu0 %v32
  %334 = vmatprep.subr.mxu0 0.0
  %335 = vmatpush1.msra.mxu0 0.0
  %336 = vmatprep.subr.mxu0 0.0
  %337 = vmatpush1.msra.mxu0 0.0
  %338 = vmatprep.subr.mxu0 0.0
  %339 = vmatpush1.msra.mxu0 0.0
  %340 = vmatprep.subr.mxu0 0.0
  %341 = vmatpush1.msra.mxu0 0.0
  %342 = vmatprep.subr.mxu0 0.0
  %343 = vmatpush1.msra.mxu0 0.0
  %344 = vmatprep.subr.mxu0 0.0
  %345 = vmatpush1.msra.mxu0 0.0
  %346 = vmatprep.subr.mxu0 0.0
  %347 = vmatpush1.msra.mxu0 0.0
  %348 = vmatprep.subr.mxu0 0.0
  %349 = vmatpush1.msra.mxu0 0.0
  %350 = vmatprep.subr.mxu0 0.0
  %351 = vmatpush1.msra.mxu0 0.0
  %352 = vmatprep.subr.mxu0 0.0
  %353 = vmatpush1.msra.mxu0 0.0
  %354 = vmatprep.subr.mxu0 0.0
  %355 = vmatpush1.msra.mxu0 0.0
  %356 = vmatprep.subr.mxu0 0.0
  %357 = vmatpush1.msra.mxu0 0.0
  %358 = vmatprep.subr.mxu0 0.0
  %359 = vmatpush1.msra.mxu0 0.0
  %360 = vmatprep.subr.mxu0 0.0
  %361 = vmatpush1.msra.mxu0 0.0
  %362 = vmatprep.subr.mxu0 0.0
  %363 = vmatpush1.msra.mxu0 0.0
  %364 = vmatprep.subr.mxu0 0.0
  %365 = vmatpush1.msra.mxu0 0.0
  %366 = vmatprep.subr.mxu0 0.0
  %367 = vmatpush1.msra.mxu0 0.0
  %368 = vmatprep.subr.mxu0 0.0
  %369 = vmatpush1.msra.mxu0 0.0
  %370 = vmatprep.subr.mxu0 0.0
  %371 = vmatpush1.msra.mxu0 0.0
  %372 = vmatprep.subr.mxu0 0.0
  %373 = vmatpush1.msra.mxu0 0.0
  %374 = vmatprep.subr.mxu0 0.0
  %375 = vmatpush1.msra.mxu0 0.0
  %376 = vmatprep.subr.mxu0 0.0
  %377 = vmatpush1.msra.mxu0 0.0
  %378 = vmatprep.subr.mxu0 0.0
  %379 = vmatpush1.msra.mxu0 0.0
  %380 = vmatprep.subr.mxu0 0.0
  %381 = vmatpush1.msra.mxu0 0.0
  %382 = vmatprep.subr.mxu0 0.0
  %383 = vmatpush1.msra.mxu0 0.0
  %384 = vmatprep.subr.mxu0 0.0
  %385 = vmatpush1.msra.mxu0 0.0
  %386 = vmatprep.subr.mxu0 0.0
  %387 = vmatpush1.msra.mxu0 0.0
  %388 = vmatprep.subr.mxu0 0.0
  %389 = vmatpush1.msra.mxu0 0.0
  %390 = vmatprep.mubr.f32.mxu0 0.0
  %391 = vmatmul.mubr.f32.gmra.mrb[0].mxu0 %v215
  %v392 = vpop.f32.mrb[0].mxu0
  %v393 = vadd.f32 %v325, %v392
  %v394 = vpop.f32.mrb[0].mxu0
  %395 = vdwg.mxu0
  %v396 = vxor.u32 %v393, 2147483648
  %v397 = vmul.f32 %v396, 1.442695
  %v398 = vpow.pop %v397
  %v399 = vadd.f32 %v398, 1.0
  %v400 = vrcp.pop %v399
  %v401 = vmul.f32 1.0, %v400
  %v402 = vtanh.pop %v393
  %v403 = vmul.f32 %v401, %v135
  %405 = vrot.lane.b32.xlu0 %v402, 64
  %v406 = vpop.permute.xlu0 %405
  %v408 = vmul.f32 %v401, %v406
  %410 = vrot.lane.b32.xlu0 %v408, 32
  %v411 = vpop.permute.xlu0 %410
  %v413 = vadd.f32 %v403, %v411
  %v414 = vtanh.pop %v413
  %416 = vrot.lane.b32.xlu0 %v414, 64
  %v417 = vpop.permute.xlu0 %416
  %v419 = vmul.f32 %v401, %v417
  %v421 = vsel %vm44, %v323, 0
  %423 = vmatprep.subr.mxu0 0.0
  %424 = vmatpush1.msra.mxu0 %v37
  %425 = vmatprep.subr.mxu0 0.0
  %426 = vmatpush1.msra.mxu0 %v38
  %427 = vmatprep.subr.mxu0 0.0
  %428 = vmatpush1.msra.mxu0 %v39
  %429 = vmatprep.subr.mxu0 0.0
  %430 = vmatpush1.msra.mxu0 %v40
  %431 = vmatprep.subr.mxu0 0.0
  %432 = vmatpush1.msra.mxu0 0.0
  %433 = vmatprep.subr.mxu0 0.0
  %434 = vmatpush1.msra.mxu0 0.0
  %435 = vmatprep.subr.mxu0 0.0
  %436 = vmatpush1.msra.mxu0 0.0
  %437 = vmatprep.subr.mxu0 0.0
  %438 = vmatpush1.msra.mxu0 0.0
  %439 = vmatprep.subr.mxu0 0.0
  %440 = vmatpush1.msra.mxu0 0.0
  %441 = vmatprep.subr.mxu0 0.0
  %442 = vmatpush1.msra.mxu0 0.0
  %443 = vmatprep.subr.mxu0 0.0
  %444 = vmatpush1.msra.mxu0 0.0
  %445 = vmatprep.subr.mxu0 0.0
  %446 = vmatpush1.msra.mxu0 0.0
  %447 = vmatprep.subr.mxu0 0.0
  %448 = vmatpush1.msra.mxu0 0.0
  %449 = vmatprep.subr.mxu0 0.0
  %450 = vmatpush1.msra.mxu0 0.0
  %451 = vmatprep.subr.mxu0 0.0
  %452 = vmatpush1.msra.mxu0 0.0
  %453 = vmatprep.subr.mxu0 0.0
  %454 = vmatpush1.msra.mxu0 0.0
  %455 = vmatprep.subr.mxu0 0.0
  %456 = vmatpush1.msra.mxu0 0.0
  %457 = vmatprep.subr.mxu0 0.0
  %458 = vmatpush1.msra.mxu0 0.0
  %459 = vmatprep.subr.mxu0 0.0
  %460 = vmatpush1.msra.mxu0 0.0
  %461 = vmatprep.subr.mxu0 0.0
  %462 = vmatpush1.msra.mxu0 0.0
  %463 = vmatprep.subr.mxu0 0.0
  %464 = vmatpush1.msra.mxu0 0.0
  %465 = vmatprep.subr.mxu0 0.0
  %466 = vmatpush1.msra.mxu0 0.0
  %467 = vmatprep.subr.mxu0 0.0
  %468 = vmatpush1.msra.mxu0 0.0
  %469 = vmatprep.subr.mxu0 0.0
  %470 = vmatpush1.msra.mxu0 0.0
  %471 = vmatprep.subr.mxu0 0.0
  %472 = vmatpush1.msra.mxu0 0.0
  %473 = vmatprep.subr.mxu0 0.0
  %474 = vmatpush1.msra.mxu0 0.0
  %475 = vmatprep.subr.mxu0 0.0
  %476 = vmatpush1.msra.mxu0 0.0
  %477 = vmatprep.subr.mxu0 0.0
  %478 = vmatpush1.msra.mxu0 0.0
  %479 = vmatprep.subr.mxu0 0.0
  %480 = vmatpush1.msra.mxu0 0.0
  %481 = vmatprep.subr.mxu0 0.0
  %482 = vmatpush1.msra.mxu0 0.0
  %483 = vmatprep.subr.mxu0 0.0
  %484 = vmatpush1.msra.mxu0 0.0
  %485 = vmatprep.subr.mxu0 0.0
  %486 = vmatpush1.msra.mxu0 0.0
  %487 = vmatprep.mubr.f32.mxu0 0.0
  %488 = vmatmul.mubr.f32.gmra.mrb[0].mxu0 %v421
  %v489 = vpop.f32.mrb[0].mxu0
  %v490 = vadd.f32 0.0, %v489
  %v491 = vpop.f32.mrb[0].mxu0
  %492 = vdwg.mxu0
  %494 = vrot.lane.b32.xlu0 %v419, 32
  %v495 = vpop.permute.xlu0 %494
  %v496 = vsel %vm44, %v495, 0
  %498 = vmatprep.subr.mxu0 0.0
  %499 = vmatpush1.msra.mxu0 %v33
  %500 = vmatprep.subr.mxu0 0.0
  %501 = vmatpush1.msra.mxu0 %v34
  %502 = vmatprep.subr.mxu0 0.0
  %503 = vmatpush1.msra.mxu0 %v35
  %504 = vmatprep.subr.mxu0 0.0
  %505 = vmatpush1.msra.mxu0 %v36
  %506 = vmatprep.subr.mxu0 0.0
  %507 = vmatpush1.msra.mxu0 0.0
  %508 = vmatprep.subr.mxu0 0.0
  %509 = vmatpush1.msra.mxu0 0.0
  %510 = vmatprep.subr.mxu0 0.0
  %511 = vmatpush1.msra.mxu0 0.0
  %512 = vmatprep.subr.mxu0 0.0
  %513 = vmatpush1.msra.mxu0 0.0
  %514 = vmatprep.subr.mxu0 0.0
  %515 = vmatpush1.msra.mxu0 0.0
  %516 = vmatprep.subr.mxu0 0.0
  %517 = vmatpush1.msra.mxu0 0.0
  %518 = vmatprep.subr.mxu0 0.0
  %519 = vmatpush1.msra.mxu0 0.0
  %520 = vmatprep.subr.mxu0 0.0
  %521 = vmatpush1.msra.mxu0 0.0
  %522 = vmatprep.subr.mxu0 0.0
  %523 = vmatpush1.msra.mxu0 0.0
  %524 = vmatprep.subr.mxu0 0.0
  %525 = vmatpush1.msra.mxu0 0.0
  %526 = vmatprep.subr.mxu0 0.0
  %527 = vmatpush1.msra.mxu0 0.0
  %528 = vmatprep.subr.mxu0 0.0
  %529 = vmatpush1.msra.mxu0 0.0
  %530 = vmatprep.subr.mxu0 0.0
  %531 = vmatpush1.msra.mxu0 0.0
  %532 = vmatprep.subr.mxu0 0.0
  %533 = vmatpush1.msra.mxu0 0.0
  %534 = vmatprep.subr.mxu0 0.0
  %535 = vmatpush1.msra.mxu0 0.0
  %536 = vmatprep.subr.mxu0 0.0
  %537 = vmatpush1.msra.mxu0 0.0
  %538 = vmatprep.subr.mxu0 0.0
  %539 = vmatpush1.msra.mxu0 0.0
  %540 = vmatprep.subr.mxu0 0.0
  %541 = vmatpush1.msra.mxu0 0.0
  %542 = vmatprep.subr.mxu0 0.0
  %543 = vmatpush1.msra.mxu0 0.0
  %544 = vmatprep.subr.mxu0 0.0
  %545 = vmatpush1.msra.mxu0 0.0
  %546 = vmatprep.subr.mxu0 0.0
  %547 = vmatpush1.msra.mxu0 0.0
  %548 = vmatprep.subr.mxu0 0.0
  %549 = vmatpush1.msra.mxu0 0.0
  %550 = vmatprep.subr.mxu0 0.0
  %551 = vmatpush1.msra.mxu0 0.0
  %552 = vmatprep.subr.mxu0 0.0
  %553 = vmatpush1.msra.mxu0 0.0
  %554 = vmatprep.subr.mxu0 0.0
  %555 = vmatpush1.msra.mxu0 0.0
  %556 = vmatprep.subr.mxu0 0.0
  %557 = vmatpush1.msra.mxu0 0.0
  %558 = vmatprep.subr.mxu0 0.0
  %559 = vmatpush1.msra.mxu0 0.0
  %560 = vmatprep.subr.mxu0 0.0
  %561 = vmatpush1.msra.mxu0 0.0
  %562 = vmatprep.mubr.f32.mxu0 0.0
  %563 = vmatmul.mubr.f32.gmra.mrb[0].mxu0 %v496
  %v564 = vpop.f32.mrb[0].mxu0
  %v565 = vadd.f32 %v490, %v564
  %v566 = vpop.f32.mrb[0].mxu0
  %567 = vdwg.mxu0
  %v568 = vadd.f32 %v565, %v291
  %v569 = vxor.u32 %v568, 2147483648
  %v570 = vmul.f32 %v569, 1.442695
  %v571 = vpow.pop %v570
  %v572 = vadd.f32 %v571, 1.0
  %v573 = vrcp.pop %v572
  %v574 = vmul.f32 1.0, %v573
  %v575 = vtanh.pop %v568
  %v576 = vmul.f32 %v574, %v311
  %578 = vrot.lane.b32.xlu0 %v575, 64
  %v579 = vpop.permute.xlu0 %578
  %v581 = vmul.f32 %v574, %v579
  %583 = vrot.lane.b32.xlu0 %v581, 32
  %v584 = vpop.permute.xlu0 %583
  %v586 = vadd.f32 %v576, %v584
  %v587 = vtanh.pop %v586
  %589 = vrot.lane.b32.xlu0 %v587, 64
  %v590 = vpop.permute.xlu0 %589
  %v592 = vmul.f32 %v574, %v590
  %vm593 = vcmp.gt.s32.totalorder %v42, 1
  %595 = vrot.lane.b32.xlu0 %v592, 32
  %v596 = vpop.permute.xlu0 %595
  %v598 = vsel %vm593, %v596, %v323
  %s599 = scalar_lea.vmem %s0, 16
  %v600 = vld [vmem:[%s599] sm:$0xff]
  %601 = vmatprep.subr.mxu0 0.0
  %602 = vmatpush1.msra.mxu0 %v29
  %603 = vmatprep.subr.mxu0 0.0
  %604 = vmatpush1.msra.mxu0 %v30
  %605 = vmatprep.subr.mxu0 0.0
  %606 = vmatpush1.msra.mxu0 %v31
  %607 = vmatprep.subr.mxu0 0.0
  %608 = vmatpush1.msra.mxu0 %v32
  %609 = vmatprep.subr.mxu0 0.0
  %610 = vmatpush1.msra.mxu0 0.0
  %611 = vmatprep.subr.mxu0 0.0
  %612 = vmatpush1.msra.mxu0 0.0
  %613 = vmatprep.subr.mxu0 0.0
  %614 = vmatpush1.msra.mxu0 0.0
  %615 = vmatprep.subr.mxu0 0.0
  %616 = vmatpush1.msra.mxu0 0.0
  %617 = vmatprep.subr.mxu0 0.0
  %618 = vmatpush1.msra.mxu0 0.0
  %619 = vmatprep.subr.mxu0 0.0
  %620 = vmatpush1.msra.mxu0 0.0
  %621 = vmatprep.subr.mxu0 0.0
  %622 = vmatpush1.msra.mxu0 0.0
  %623 = vmatprep.subr.mxu0 0.0
  %624 = vmatpush1.msra.mxu0 0.0
  %625 = vmatprep.subr.mxu0 0.0
  %626 = vmatpush1.msra.mxu0 0.0
  %627 = vmatprep.subr.mxu0 0.0
  %628 = vmatpush1.msra.mxu0 0.0
  %629 = vmatprep.subr.mxu0 0.0
  %630 = vmatpush1.msra.mxu0 0.0
  %631 = vmatprep.subr.mxu0 0.0
  %632 = vmatpush1.msra.mxu0 0.0
  %633 = vmatprep.subr.mxu0 0.0
  %634 = vmatpush1.msra.mxu0 0.0
  %635 = vmatprep.subr.mxu0 0.0
  %636 = vmatpush1.msra.mxu0 0.0
  %637 = vmatprep.subr.mxu0 0.0
  %638 = vmatpush1.msra.mxu0 0.0
  %639 = vmatprep.subr.mxu0 0.0
  %640 = vmatpush1.msra.mxu0 0.0
  %641 = vmatprep.subr.mxu0 0.0
  %642 = vmatpush1.msra.mxu0 0.0
  %643 = vmatprep.subr.mxu0 0.0
  %644 = vmatpush1.msra.mxu0 0.0
  %645 = vmatprep.subr.mxu0 0.0
  %646 = vmatpush1.msra.mxu0 0.0
  %647 = vmatprep.subr.mxu0 0.0
  %648 = vmatpush1.msra.mxu0 0.0
  %649 = vmatprep.subr.mxu0 0.0
  %650 = vmatpush1.msra.mxu0 0.0
  %651 = vmatprep.subr.mxu0 0.0
  %652 = vmatpush1.msra.mxu0 0.0
  %653 = vmatprep.subr.mxu0 0.0
  %654 = vmatpush1.msra.mxu0 0.0
  %655 = vmatprep.subr.mxu0 0.0
  %656 = vmatpush1.msra.mxu0 0.0
  %657 = vmatprep.subr.mxu0 0.0
  %658 = vmatpush1.msra.mxu0 0.0
  %659 = vmatprep.subr.mxu0 0.0
  %660 = vmatpush1.msra.mxu0 0.0
  %661 = vmatprep.subr.mxu0 0.0
  %662 = vmatpush1.msra.mxu0 0.0
  %663 = vmatprep.subr.mxu0 0.0
  %664 = vmatpush1.msra.mxu0 0.0
  %665 = vmatprep.mubr.f32.mxu0 0.0
  %666 = vmatmul.mubr.f32.gmra.mrb[0].mxu0 %v496
  %v667 = vpop.f32.mrb[0].mxu0
  %v668 = vadd.f32 %v600, %v667
  %v669 = vpop.f32.mrb[0].mxu0
  %670 = vdwg.mxu0
  %v671 = vxor.u32 %v668, 2147483648
  %v672 = vmul.f32 %v671, 1.442695
  %v673 = vpow.pop %v672
  %v674 = vadd.f32 %v673, 1.0
  %v675 = vrcp.pop %v674
  %v676 = vmul.f32 1.0, %v675
  %v677 = vtanh.pop %v668
  %v678 = vmul.f32 %v676, %v413
  %680 = vrot.lane.b32.xlu0 %v677, 64
  %v681 = vpop.permute.xlu0 %680
  %v683 = vmul.f32 %v676, %v681
  %685 = vrot.lane.b32.xlu0 %v683, 32
  %v686 = vpop.permute.xlu0 %685
  %v688 = vadd.f32 %v678, %v686
  %v689 = vtanh.pop %v688
  %691 = vrot.lane.b32.xlu0 %v689, 64
  %v692 = vpop.permute.xlu0 %691
  %v694 = vmul.f32 %v676, %v692
  %v696 = vsel %vm44, %v598, 0
  %698 = vmatprep.subr.mxu0 0.0
  %699 = vmatpush1.msra.mxu0 %v37
  %700 = vmatprep.subr.mxu0 0.0
  %701 = vmatpush1.msra.mxu0 %v38
  %702 = vmatprep.subr.mxu0 0.0
  %703 = vmatpush1.msra.mxu0 %v39
  %704 = vmatprep.subr.mxu0 0.0
  %705 = vmatpush1.msra.mxu0 %v40
  %706 = vmatprep.subr.mxu0 0.0
  %707 = vmatpush1.msra.mxu0 0.0
  %708 = vmatprep.subr.mxu0 0.0
  %709 = vmatpush1.msra.mxu0 0.0
  %710 = vmatprep.subr.mxu0 0.0
  %711 = vmatpush1.msra.mxu0 0.0
  %712 = vmatprep.subr.mxu0 0.0
  %713 = vmatpush1.msra.mxu0 0.0
  %714 = vmatprep.subr.mxu0 0.0
  %715 = vmatpush1.msra.mxu0 0.0
  %716 = vmatprep.subr.mxu0 0.0
  %717 = vmatpush1.msra.mxu0 0.0
  %718 = vmatprep.subr.mxu0 0.0
  %719 = vmatpush1.msra.mxu0 0.0
  %720 = vmatprep.subr.mxu0 0.0
  %721 = vmatpush1.msra.mxu0 0.0
  %722 = vmatprep.subr.mxu0 0.0
  %723 = vmatpush1.msra.mxu0 0.0
  %724 = vmatprep.subr.mxu0 0.0
  %725 = vmatpush1.msra.mxu0 0.0
  %726 = vmatprep.subr.mxu0 0.0
  %727 = vmatpush1.msra.mxu0 0.0
  %728 = vmatprep.subr.mxu0 0.0
  %729 = vmatpush1.msra.mxu0 0.0
  %730 = vmatprep.subr.mxu0 0.0
  %731 = vmatpush1.msra.mxu0 0.0
  %732 = vmatprep.subr.mxu0 0.0
  %733 = vmatpush1.msra.mxu0 0.0
  %734 = vmatprep.subr.mxu0 0.0
  %735 = vmatpush1.msra.mxu0 0.0
  %736 = vmatprep.subr.mxu0 0.0
  %737 = vmatpush1.msra.mxu0 0.0
  %738 = vmatprep.subr.mxu0 0.0
  %739 = vmatpush1.msra.mxu0 0.0
  %740 = vmatprep.subr.mxu0 0.0
  %741 = vmatpush1.msra.mxu0 0.0
  %742 = vmatprep.subr.mxu0 0.0
  %743 = vmatpush1.msra.mxu0 0.0
  %744 = vmatprep.subr.mxu0 0.0
  %745 = vmatpush1.msra.mxu0 0.0
  %746 = vmatprep.subr.mxu0 0.0
  %747 = vmatpush1.msra.mxu0 0.0
  %748 = vmatprep.subr.mxu0 0.0
  %749 = vmatpush1.msra.mxu0 0.0
  %750 = vmatprep.subr.mxu0 0.0
  %751 = vmatpush1.msra.mxu0 0.0
  %752 = vmatprep.subr.mxu0 0.0
  %753 = vmatpush1.msra.mxu0 0.0
  %754 = vmatprep.subr.mxu0 0.0
  %755 = vmatpush1.msra.mxu0 0.0
  %756 = vmatprep.subr.mxu0 0.0
  %757 = vmatpush1.msra.mxu0 0.0
  %758 = vmatprep.subr.mxu0 0.0
  %759 = vmatpush1.msra.mxu0 0.0
  %760 = vmatprep.subr.mxu0 0.0
  %761 = vmatpush1.msra.mxu0 0.0
  %762 = vmatprep.mubr.f32.mxu0 0.0
  %763 = vmatmul.mubr.f32.gmra.mrb[0].mxu0 %v696
  %v764 = vpop.f32.mrb[0].mxu0
  %v765 = vadd.f32 0.0, %v764
  %v766 = vpop.f32.mrb[0].mxu0
  %767 = vdwg.mxu0
  %769 = vrot.lane.b32.xlu0 %v694, 32
  %v770 = vpop.permute.xlu0 %769
  %v771 = vsel %vm44, %v770, 0
  %773 = vmatprep.subr.mxu0 0.0
  %774 = vmatpush1.msra.mxu0 %v33
  %775 = vmatprep.subr.mxu0 0.0
  %776 = vmatpush1.msra.mxu0 %v34
  %777 = vmatprep.subr.mxu0 0.0
  %778 = vmatpush1.msra.mxu0 %v35
  %779 = vmatprep.subr.mxu0 0.0
  %780 = vmatpush1.msra.mxu0 %v36
  %781 = vmatprep.subr.mxu0 0.0
  %782 = vmatpush1.msra.mxu0 0.0
  %783 = vmatprep.subr.mxu0 0.0
  %784 = vmatpush1.msra.mxu0 0.0
  %785 = vmatprep.subr.mxu0 0.0
  %786 = vmatpush1.msra.mxu0 0.0
  %787 = vmatprep.subr.mxu0 0.0
  %788 = vmatpush1.msra.mxu0 0.0
  %789 = vmatprep.subr.mxu0 0.0
  %790 = vmatpush1.msra.mxu0 0.0
  %791 = vmatprep.subr.mxu0 0.0
  %792 = vmatpush1.msra.mxu0 0.0
  %793 = vmatprep.subr.mxu0 0.0
  %794 = vmatpush1.msra.mxu0 0.0
  %795 = vmatprep.subr.mxu0 0.0
  %796 = vmatpush1.msra.mxu0 0.0
  %797 = vmatprep.subr.mxu0 0.0
  %798 = vmatpush1.msra.mxu0 0.0
  %799 = vmatprep.subr.mxu0 0.0
  %800 = vmatpush1.msra.mxu0 0.0
  %801 = vmatprep.subr.mxu0 0.0
  %802 = vmatpush1.msra.mxu0 0.0
  %803 = vmatprep.subr.mxu0 0.0
  %804 = vmatpush1.msra.mxu0 0.0
  %805 = vmatprep.subr.mxu0 0.0
  %806 = vmatpush1.msra.mxu0 0.0
  %807 = vmatprep.subr.mxu0 0.0
  %808 = vmatpush1.msra.mxu0 0.0
  %809 = vmatprep.subr.mxu0 0.0
  %810 = vmatpush1.msra.mxu0 0.0
  %811 = vmatprep.subr.mxu0 0.0
  %812 = vmatpush1.msra.mxu0 0.0
  %813 = vmatprep.subr.mxu0 0.0
  %814 = vmatpush1.msra.mxu0 0.0
  %815 = vmatprep.subr.mxu0 0.0
  %816 = vmatpush1.msra.mxu0 0.0
  %817 = vmatprep.subr.mxu0 0.0
  %818 = vmatpush1.msra.mxu0 0.0
  %819 = vmatprep.subr.mxu0 0.0
  %820 = vmatpush1.msra.mxu0 0.0
  %821 = vmatprep.subr.mxu0 0.0
  %822 = vmatpush1.msra.mxu0 0.0
  %823 = vmatprep.subr.mxu0 0.0
  %824 = vmatpush1.msra.mxu0 0.0
  %825 = vmatprep.subr.mxu0 0.0
  %826 = vmatpush1.msra.mxu0 0.0
  %827 = vmatprep.subr.mxu0 0.0
  %828 = vmatpush1.msra.mxu0 0.0
  %829 = vmatprep.subr.mxu0 0.0
  %830 = vmatpush1.msra.mxu0 0.0
  %831 = vmatprep.subr.mxu0 0.0
  %832 = vmatpush1.msra.mxu0 0.0
  %833 = vmatprep.subr.mxu0 0.0
  %834 = vmatpush1.msra.mxu0 0.0
  %835 = vmatprep.subr.mxu0 0.0
  %836 = vmatpush1.msra.mxu0 0.0
  %837 = vmatprep.mubr.f32.mxu0 0.0
  %838 = vmatmul.mubr.f32.gmra.mrb[0].mxu0 %v771
  %v839 = vpop.f32.mrb[0].mxu0
  %v840 = vadd.f32 %v765, %v839
  %v841 = vpop.f32.mrb[0].mxu0
  %842 = vdwg.mxu0
  %v843 = vadd.f32 %v840, %v291
  %v844 = vxor.u32 %v843, 2147483648
  %v845 = vmul.f32 %v844, 1.442695
  %v846 = vpow.pop %v845
  %v847 = vadd.f32 %v846, 1.0
  %v848 = vrcp.pop %v847
  %v849 = vmul.f32 1.0, %v848
  %v850 = vtanh.pop %v843
  %v851 = vmul.f32 %v849, %v586
  %853 = vrot.lane.b32.xlu0 %v850, 64
  %v854 = vpop.permute.xlu0 %853
  %v856 = vmul.f32 %v849, %v854
  %858 = vrot.lane.b32.xlu0 %v856, 32
  %v859 = vpop.permute.xlu0 %858
  %v861 = vadd.f32 %v851, %v859
  %v862 = vtanh.pop %v861
  %864 = vrot.lane.b32.xlu0 %v862, 64
  %v865 = vpop.permute.xlu0 %864
  %v867 = vmul.f32 %v849, %v865
  %vm868 = vcmp.gt.s32.totalorder %v42, 2
  %870 = vrot.lane.b32.xlu0 %v867, 32
  %v871 = vpop.permute.xlu0 %870
  %v873 = vsel %vm868, %v871, %v598
  %s874 = scalar_lea.vmem %s0, 24
  %v875 = vld [vmem:[%s874] sm:$0xff]
  %876 = vmatprep.subr.mxu0 0.0
  %877 = vmatpush1.msra.mxu0 %v29
  %878 = vmatprep.subr.mxu0 0.0
  %879 = vmatpush1.msra.mxu0 %v30
  %880 = vmatprep.subr.mxu0 0.0
  %881 = vmatpush1.msra.mxu0 %v31
  %882 = vmatprep.subr.mxu0 0.0
  %883 = vmatpush1.msra.mxu0 %v32
  %884 = vmatprep.subr.mxu0 0.0
  %885 = vmatpush1.msra.mxu0 0.0
  %886 = vmatprep.subr.mxu0 0.0
  %887 = vmatpush1.msra.mxu0 0.0
  %888 = vmatprep.subr.mxu0 0.0
  %889 = vmatpush1.msra.mxu0 0.0
  %890 = vmatprep.subr.mxu0 0.0
  %891 = vmatpush1.msra.mxu0 0.0
  %892 = vmatprep.subr.mxu0 0.0
  %893 = vmatpush1.msra.mxu0 0.0
  %894 = vmatprep.subr.mxu0 0.0
  %895 = vmatpush1.msra.mxu0 0.0
  %896 = vmatprep.subr.mxu0 0.0
  %897 = vmatpush1.msra.mxu0 0.0
  %898 = vmatprep.subr.mxu0 0.0
  %899 = vmatpush1.msra.mxu0 0.0
  %900 = vmatprep.subr.mxu0 0.0
  %901 = vmatpush1.msra.mxu0 0.0
  %902 = vmatprep.subr.mxu0 0.0
  %903 = vmatpush1.msra.mxu0 0.0
  %904 = vmatprep.subr.mxu0 0.0
  %905 = vmatpush1.msra.mxu0 0.0
  %906 = vmatprep.subr.mxu0 0.0
  %907 = vmatpush1.msra.mxu0 0.0
  %908 = vmatprep.subr.mxu0 0.0
  %909 = vmatpush1.msra.mxu0 0.0
  %910 = vmatprep.subr.mxu0 0.0
  %911 = vmatpush1.msra.mxu0 0.0
  %912 = vmatprep.subr.mxu0 0.0
  %913 = vmatpush1.msra.mxu0 0.0
  %914 = vmatprep.subr.mxu0 0.0
  %915 = vmatpush1.msra.mxu0 0.0
  %916 = vmatprep.subr.mxu0 0.0
  %917 = vmatpush1.msra.mxu0 0.0
  %918 = vmatprep.subr.mxu0 0.0
  %919 = vmatpush1.msra.mxu0 0.0
  %920 = vmatprep.subr.mxu0 0.0
  %921 = vmatpush1.msra.mxu0 0.0
  %922 = vmatprep.subr.mxu0 0.0
  %923 = vmatpush1.msra.mxu0 0.0
  %924 = vmatprep.subr.mxu0 0.0
  %925 = vmatpush1.msra.mxu0 0.0
  %926 = vmatprep.subr.mxu0 0.0
  %927 = vmatpush1.msra.mxu0 0.0
  %928 = vmatprep.subr.mxu0 0.0
  %929 = vmatpush1.msra.mxu0 0.0
  %930 = vmatprep.subr.mxu0 0.0
  %931 = vmatpush1.msra.mxu0 0.0
  %932 = vmatprep.subr.mxu0 0.0
  %933 = vmatpush1.msra.mxu0 0.0
  %934 = vmatprep.subr.mxu0 0.0
  %935 = vmatpush1.msra.mxu0 0.0
  %936 = vmatprep.subr.mxu0 0.0
  %937 = vmatpush1.msra.mxu0 0.0
  %938 = vmatprep.subr.mxu0 0.0
  %939 = vmatpush1.msra.mxu0 0.0
  %940 = vmatprep.mubr.f32.mxu0 0.0
  %941 = vmatmul.mubr.f32.gmra.mrb[0].mxu0 %v771
  %v942 = vpop.f32.mrb[0].mxu0
  %v943 = vadd.f32 %v875, %v942
  %v944 = vpop.f32.mrb[0].mxu0
  %945 = vdwg.mxu0
  %v946 = vxor.u32 %v943, 2147483648
  %v947 = vmul.f32 %v946, 1.442695
  %v948 = vpow.pop %v947
  %v949 = vadd.f32 %v948, 1.0
  %v950 = vrcp.pop %v949
  %v951 = vmul.f32 1.0, %v950
  %v952 = vtanh.pop %v943
  %v953 = vmul.f32 %v951, %v688
  %955 = vrot.lane.b32.xlu0 %v952, 64
  %v956 = vpop.permute.xlu0 %955
  %v958 = vmul.f32 %v951, %v956
  %960 = vrot.lane.b32.xlu0 %v958, 32
  %v961 = vpop.permute.xlu0 %960
  %v963 = vadd.f32 %v953, %v961
  %v964 = vtanh.pop %v963
  %966 = vrot.lane.b32.xlu0 %v964, 64
  %v967 = vpop.permute.xlu0 %966
  %v969 = vmul.f32 %v951, %v967
  %v971 = vsel %vm44, %v873, 0
  %973 = vmatprep.subr.mxu0 0.0
  %974 = vmatpush1.msra.mxu0 %v37
  %975 = vmatprep.subr.mxu0 0.0
  %976 = vmatpush1.msra.mxu0 %v38
  %977 = vmatprep.subr.mxu0 0.0
  %978 = vmatpush1.msra.mxu0 %v39
  %979 = vmatprep.subr.mxu0 0.0
  %980 = vmatpush1.msra.mxu0 %v40
  %981 = vmatprep.subr.mxu0 0.0
  %982 = vmatpush1.msra.mxu0 0.0
  %983 = vmatprep.subr.mxu0 0.0
  %984 = vmatpush1.msra.mxu0 0.0
  %985 = vmatprep.subr.mxu0 0.0
  %986 = vmatpush1.msra.mxu0 0.0
  %987 = vmatprep.subr.mxu0 0.0
  %988 = vmatpush1.msra.mxu0 0.0
  %989 = vmatprep.subr.mxu0 0.0
  %990 = vmatpush1.msra.mxu0 0.0
  %991 = vmatprep.subr.mxu0 0.0
  %992 = vmatpush1.msra.mxu0 0.0
  %993 = vmatprep.subr.mxu0 0.0
  %994 = vmatpush1.msra.mxu0 0.0
  %995 = vmatprep.subr.mxu0 0.0
  %996 = vmatpush1.msra.mxu0 0.0
  %997 = vmatprep.subr.mxu0 0.0
  %998 = vmatpush1.msra.mxu0 0.0
  %999 = vmatprep.subr.mxu0 0.0
  %1000 = vmatpush1.msra.mxu0 0.0
  %1001 = vmatprep.subr.mxu0 0.0
  %1002 = vmatpush1.msra.mxu0 0.0
  %1003 = vmatprep.subr.mxu0 0.0
  %1004 = vmatpush1.msra.mxu0 0.0
  %1005 = vmatprep.subr.mxu0 0.0
  %1006 = vmatpush1.msra.mxu0 0.0
  %1007 = vmatprep.subr.mxu0 0.0
  %1008 = vmatpush1.msra.mxu0 0.0
  %1009 = vmatprep.subr.mxu0 0.0
  %1010 = vmatpush1.msra.mxu0 0.0
  %1011 = vmatprep.subr.mxu0 0.0
  %1012 = vmatpush1.msra.mxu0 0.0
  %1013 = vmatprep.subr.mxu0 0.0
  %1014 = vmatpush1.msra.mxu0 0.0
  %1015 = vmatprep.subr.mxu0 0.0
  %1016 = vmatpush1.msra.mxu0 0.0
  %1017 = vmatprep.subr.mxu0 0.0
  %1018 = vmatpush1.msra.mxu0 0.0
  %1019 = vmatprep.subr.mxu0 0.0
  %1020 = vmatpush1.msra.mxu0 0.0
  %1021 = vmatprep.subr.mxu0 0.0
  %1022 = vmatpush1.msra.mxu0 0.0
  %1023 = vmatprep.subr.mxu0 0.0
  %1024 = vmatpush1.msra.mxu0 0.0
  %1025 = vmatprep.subr.mxu0 0.0
  %1026 = vmatpush1.msra.mxu0 0.0
  %1027 = vmatprep.subr.mxu0 0.0
  %1028 = vmatpush1.msra.mxu0 0.0
  %1029 = vmatprep.subr.mxu0 0.0
  %1030 = vmatpush1.msra.mxu0 0.0
  %1031 = vmatprep.subr.mxu0 0.0
  %1032 = vmatpush1.msra.mxu0 0.0
  %1033 = vmatprep.subr.mxu0 0.0
  %1034 = vmatpush1.msra.mxu0 0.0
  %1035 = vmatprep.subr.mxu0 0.0
  %1036 = vmatpush1.msra.mxu0 0.0
  %1037 = vmatprep.mubr.f32.mxu0 0.0
  %1038 = vmatmul.mubr.f32.gmra.mrb[0].mxu0 %v971
  %v1039 = vpop.f32.mrb[0].mxu0
  %v1040 = vadd.f32 0.0, %v1039
  %v1041 = vpop.f32.mrb[0].mxu0
  %1042 = vdwg.mxu0
  %1044 = vrot.lane.b32.xlu0 %v969, 32
  %v1045 = vpop.permute.xlu0 %1044
  %v1046 = vsel %vm44, %v1045, 0
  %1048 = vmatprep.subr.mxu0 0.0
  %1049 = vmatpush1.msra.mxu0 %v33
  %1050 = vmatprep.subr.mxu0 0.0
  %1051 = vmatpush1.msra.mxu0 %v34
  %1052 = vmatprep.subr.mxu0 0.0
  %1053 = vmatpush1.msra.mxu0 %v35
  %1054 = vmatprep.subr.mxu0 0.0
  %1055 = vmatpush1.msra.mxu0 %v36
  %1056 = vmatprep.subr.mxu0 0.0
  %1057 = vmatpush1.msra.mxu0 0.0
  %1058 = vmatprep.subr.mxu0 0.0
  %1059 = vmatpush1.msra.mxu0 0.0
  %1060 = vmatprep.subr.mxu0 0.0
  %1061 = vmatpush1.msra.mxu0 0.0
  %1062 = vmatprep.subr.mxu0 0.0
  %1063 = vmatpush1.msra.mxu0 0.0
  %1064 = vmatprep.subr.mxu0 0.0
  %1065 = vmatpush1.msra.mxu0 0.0
  %1066 = vmatprep.subr.mxu0 0.0
  %1067 = vmatpush1.msra.mxu0 0.0
  %1068 = vmatprep.subr.mxu0 0.0
  %1069 = vmatpush1.msra.mxu0 0.0
  %1070 = vmatprep.subr.mxu0 0.0
  %1071 = vmatpush1.msra.mxu0 0.0
  %1072 = vmatprep.subr.mxu0 0.0
  %1073 = vmatpush1.msra.mxu0 0.0
  %1074 = vmatprep.subr.mxu0 0.0
  %1075 = vmatpush1.msra.mxu0 0.0
  %1076 = vmatprep.subr.mxu0 0.0
  %1077 = vmatpush1.msra.mxu0 0.0
  %1078 = vmatprep.subr.mxu0 0.0
  %1079 = vmatpush1.msra.mxu0 0.0
  %1080 = vmatprep.subr.mxu0 0.0
  %1081 = vmatpush1.msra.mxu0 0.0
  %1082 = vmatprep.subr.mxu0 0.0
  %1083 = vmatpush1.msra.mxu0 0.0
  %1084 = vmatprep.subr.mxu0 0.0
  %1085 = vmatpush1.msra.mxu0 0.0
  %1086 = vmatprep.subr.mxu0 0.0
  %1087 = vmatpush1.msra.mxu0 0.0
  %1088 = vmatprep.subr.mxu0 0.0
  %1089 = vmatpush1.msra.mxu0 0.0
  %1090 = vmatprep.subr.mxu0 0.0
  %1091 = vmatpush1.msra.mxu0 0.0
  %1092 = vmatprep.subr.mxu0 0.0
  %1093 = vmatpush1.msra.mxu0 0.0
  %1094 = vmatprep.subr.mxu0 0.0
  %1095 = vmatpush1.msra.mxu0 0.0
  %1096 = vmatprep.subr.mxu0 0.0
  %1097 = vmatpush1.msra.mxu0 0.0
  %1098 = vmatprep.subr.mxu0 0.0
  %1099 = vmatpush1.msra.mxu0 0.0
  %1100 = vmatprep.subr.mxu0 0.0
  %1101 = vmatpush1.msra.mxu0 0.0
  %1102 = vmatprep.subr.mxu0 0.0
  %1103 = vmatpush1.msra.mxu0 0.0
  %1104 = vmatprep.subr.mxu0 0.0
  %1105 = vmatpush1.msra.mxu0 0.0
  %1106 = vmatprep.subr.mxu0 0.0
  %1107 = vmatpush1.msra.mxu0 0.0
  %1108 = vmatprep.subr.mxu0 0.0
  %1109 = vmatpush1.msra.mxu0 0.0
  %1110 = vmatprep.subr.mxu0 0.0
  %1111 = vmatpush1.msra.mxu0 0.0
  %1112 = vmatprep.mubr.f32.mxu0 0.0
  %1113 = vmatmul.mubr.f32.gmra.mrb[0].mxu0 %v1046
  %v1114 = vpop.f32.mrb[0].mxu0
  %v1115 = vadd.f32 %v1040, %v1114
  %v1116 = vpop.f32.mrb[0].mxu0
  %1117 = vdwg.mxu0
  %v1118 = vadd.f32 %v1115, %v291
  %v1119 = vxor.u32 %v1118, 2147483648
  %v1120 = vmul.f32 %v1119, 1.442695
  %v1121 = vpow.pop %v1120
  %v1122 = vadd.f32 %v1121, 1.0
  %v1123 = vrcp.pop %v1122
  %v1124 = vmul.f32 1.0, %v1123
  %v1125 = vtanh.pop %v1118
  %v1126 = vmul.f32 %v1124, %v861
  %1128 = vrot.lane.b32.xlu0 %v1125, 64
  %v1129 = vpop.permute.xlu0 %1128
  %v1131 = vmul.f32 %v1124, %v1129
  %1133 = vrot.lane.b32.xlu0 %v1131, 32
  %v1134 = vpop.permute.xlu0 %1133
  %v1136 = vadd.f32 %v1126, %v1134
  %v1137 = vtanh.pop %v1136
  %1139 = vrot.lane.b32.xlu0 %v1137, 64
  %v1140 = vpop.permute.xlu0 %1139
  %v1142 = vmul.f32 %v1124, %v1140
  %vm1143 = vcmp.gt.s32.totalorder %v42, 3
  %1145 = vrot.lane.b32.xlu0 %v1142, 32
  %v1146 = vpop.permute.xlu0 %1145
  %v1148 = vsel %vm1143, %v1146, %v873
  %s1149 = scalar_lea.vmem %s0, 32
  %v1150 = vld [vmem:[%s1149] sm:$0xff]
  %1151 = vmatprep.subr.mxu0 0.0
  %1152 = vmatpush1.msra.mxu0 %v29
  %1153 = vmatprep.subr.mxu0 0.0
  %1154 = vmatpush1.msra.mxu0 %v30
  %1155 = vmatprep.subr.mxu0 0.0
  %1156 = vmatpush1.msra.mxu0 %v31
  %1157 = vmatprep.subr.mxu0 0.0
  %1158 = vmatpush1.msra.mxu0 %v32
  %1159 = vmatprep.subr.mxu0 0.0
  %1160 = vmatpush1.msra.mxu0 0.0
  %1161 = vmatprep.subr.mxu0 0.0
  %1162 = vmatpush1.msra.mxu0 0.0
  %1163 = vmatprep.subr.mxu0 0.0
  %1164 = vmatpush1.msra.mxu0 0.0
  %1165 = vmatprep.subr.mxu0 0.0
  %1166 = vmatpush1.msra.mxu0 0.0
  %1167 = vmatprep.subr.mxu0 0.0
  %1168 = vmatpush1.msra.mxu0 0.0
  %1169 = vmatprep.subr.mxu0 0.0
  %1170 = vmatpush1.msra.mxu0 0.0
  %1171 = vmatprep.subr.mxu0 0.0
  %1172 = vmatpush1.msra.mxu0 0.0
  %1173 = vmatprep.subr.mxu0 0.0
  %1174 = vmatpush1.msra.mxu0 0.0
  %1175 = vmatprep.subr.mxu0 0.0
  %1176 = vmatpush1.msra.mxu0 0.0
  %1177 = vmatprep.subr.mxu0 0.0
  %1178 = vmatpush1.msra.mxu0 0.0
  %1179 = vmatprep.subr.mxu0 0.0
  %1180 = vmatpush1.msra.mxu0 0.0
  %1181 = vmatprep.subr.mxu0 0.0
  %1182 = vmatpush1.msra.mxu0 0.0
  %1183 = vmatprep.subr.mxu0 0.0
  %1184 = vmatpush1.msra.mxu0 0.0
  %1185 = vmatprep.subr.mxu0 0.0
  %1186 = vmatpush1.msra.mxu0 0.0
  %1187 = vmatprep.subr.mxu0 0.0
  %1188 = vmatpush1.msra.mxu0 0.0
  %1189 = vmatprep.subr.mxu0 0.0
  %1190 = vmatpush1.msra.mxu0 0.0
  %1191 = vmatprep.subr.mxu0 0.0
  %1192 = vmatpush1.msra.mxu0 0.0
  %1193 = vmatprep.subr.mxu0 0.0
  %1194 = vmatpush1.msra.mxu0 0.0
  %1195 = vmatprep.subr.mxu0 0.0
  %1196 = vmatpush1.msra.mxu0 0.0
  %1197 = vmatprep.subr.mxu0 0.0
  %1198 = vmatpush1.msra.mxu0 0.0
  %1199 = vmatprep.subr.mxu0 0.0
  %1200 = vmatpush1.msra.mxu0 0.0
  %1201 = vmatprep.subr.mxu0 0.0
  %1202 = vmatpush1.msra.mxu0 0.0
  %1203 = vmatprep.subr.mxu0 0.0
  %1204 = vmatpush1.msra.mxu0 0.0
  %1205 = vmatprep.subr.mxu0 0.0
  %1206 = vmatpush1.msra.mxu0 0.0
  %1207 = vmatprep.subr.mxu0 0.0
  %1208 = vmatpush1.msra.mxu0 0.0
  %1209 = vmatprep.subr.mxu0 0.0
  %1210 = vmatpush1.msra.mxu0 0.0
  %1211 = vmatprep.subr.mxu0 0.0
  %1212 = vmatpush1.msra.mxu0 0.0
  %1213 = vmatprep.subr.mxu0 0.0
  %1214 = vmatpush1.msra.mxu0 0.0
  %1215 = vmatprep.mubr.f32.mxu0 0.0
  %1216 = vmatmul.mubr.f32.gmra.mrb[0].mxu0 %v1046
  %v1217 = vpop.f32.mrb[0].mxu0
  %v1218 = vadd.f32 %v1150, %v1217
  %v1219 = vpop.f32.mrb[0].mxu0
  %1220 = vdwg.mxu0
  %v1221 = vxor.u32 %v1218, 2147483648
  %v1222 = vmul.f32 %v1221, 1.442695
  %v1223 = vpow.pop %v1222
  %v1224 = vadd.f32 %v1223, 1.0
  %v1225 = vrcp.pop %v1224
  %v1226 = vmul.f32 1.0, %v1225
  %v1227 = vtanh.pop %v1218
  %v1228 = vmul.f32 %v1226, %v963
  %1230 = vrot.lane.b32.xlu0 %v1227, 64
  %v1231 = vpop.permute.xlu0 %1230
  %v1233 = vmul.f32 %v1226, %v1231
  %1235 = vrot.lane.b32.xlu0 %v1233, 32
  %v1236 = vpop.permute.xlu0 %1235
  %v1238 = vadd.f32 %v1228, %v1236
  %v1239 = vtanh.pop %v1238
  %1241 = vrot.lane.b32.xlu0 %v1239, 64
  %v1242 = vpop.permute.xlu0 %1241
  %v1244 = vmul.f32 %v1226, %v1242
  %v1246 = vsel %vm44, %v1148, 0
  %1248 = vmatprep.subr.mxu0 0.0
  %1249 = vmatpush1.msra.mxu0 %v37
  %1250 = vmatprep.subr.mxu0 0.0
  %1251 = vmatpush1.msra.mxu0 %v38
  %1252 = vmatprep.subr.mxu0 0.0
  %1253 = vmatpush1.msra.mxu0 %v39
  %1254 = vmatprep.subr.mxu0 0.0
  %1255 = vmatpush1.msra.mxu0 %v40
  %1256 = vmatprep.subr.mxu0 0.0
  %1257 = vmatpush1.msra.mxu0 0.0
  %1258 = vmatprep.subr.mxu0 0.0
  %1259 = vmatpush1.msra.mxu0 0.0
  %1260 = vmatprep.subr.mxu0 0.0
  %1261 = vmatpush1.msra.mxu0 0.0
  %1262 = vmatprep.subr.mxu0 0.0
  %1263 = vmatpush1.msra.mxu0 0.0
  %1264 = vmatprep.subr.mxu0 0.0
  %1265 = vmatpush1.msra.mxu0 0.0
  %1266 = vmatprep.subr.mxu0 0.0
  %1267 = vmatpush1.msra.mxu0 0.0
  %1268 = vmatprep.subr.mxu0 0.0
  %1269 = vmatpush1.msra.mxu0 0.0
  %1270 = vmatprep.subr.mxu0 0.0
  %1271 = vmatpush1.msra.mxu0 0.0
  %1272 = vmatprep.subr.mxu0 0.0
  %1273 = vmatpush1.msra.mxu0 0.0
  %1274 = vmatprep.subr.mxu0 0.0
  %1275 = vmatpush1.msra.mxu0 0.0
  %1276 = vmatprep.subr.mxu0 0.0
  %1277 = vmatpush1.msra.mxu0 0.0
  %1278 = vmatprep.subr.mxu0 0.0
  %1279 = vmatpush1.msra.mxu0 0.0
  %1280 = vmatprep.subr.mxu0 0.0
  %1281 = vmatpush1.msra.mxu0 0.0
  %1282 = vmatprep.subr.mxu0 0.0
  %1283 = vmatpush1.msra.mxu0 0.0
  %1284 = vmatprep.subr.mxu0 0.0
  %1285 = vmatpush1.msra.mxu0 0.0
  %1286 = vmatprep.subr.mxu0 0.0
  %1287 = vmatpush1.msra.mxu0 0.0
  %1288 = vmatprep.subr.mxu0 0.0
  %1289 = vmatpush1.msra.mxu0 0.0
  %1290 = vmatprep.subr.mxu0 0.0
  %1291 = vmatpush1.msra.mxu0 0.0
  %1292 = vmatprep.subr.mxu0 0.0
  %1293 = vmatpush1.msra.mxu0 0.0
  %1294 = vmatprep.subr.mxu0 0.0
  %1295 = vmatpush1.msra.mxu0 0.0
  %1296 = vmatprep.subr.mxu0 0.0
  %1297 = vmatpush1.msra.mxu0 0.0
  %1298 = vmatprep.subr.mxu0 0.0
  %1299 = vmatpush1.msra.mxu0 0.0
  %1300 = vmatprep.subr.mxu0 0.0
  %1301 = vmatpush1.msra.mxu0 0.0
  %1302 = vmatprep.subr.mxu0 0.0
  %1303 = vmatpush1.msra.mxu0 0.0
  %1304 = vmatprep.subr.mxu0 0.0
  %1305 = vmatpush1.msra.mxu0 0.0
  %1306 = vmatprep.subr.mxu0 0.0
  %1307 = vmatpush1.msra.mxu0 0.0
  %1308 = vmatprep.subr.mxu0 0.0
  %1309 = vmatpush1.msra.mxu0 0.0
  %1310 = vmatprep.subr.mxu0 0.0
  %1311 = vmatpush1.msra.mxu0 0.0
  %1312 = vmatprep.mubr.f32.mxu0 0.0
  %1313 = vmatmul.mubr.f32.gmra.mrb[0].mxu0 %v1246
  %v1314 = vpop.f32.mrb[0].mxu0
  %v1315 = vadd.f32 0.0, %v1314
  %v1316 = vpop.f32.mrb[0].mxu0
  %1317 = vdwg.mxu0
  %1319 = vrot.lane.b32.xlu0 %v1244, 32
  %v1320 = vpop.permute.xlu0 %1319
  %v1321 = vsel %vm44, %v1320, 0
  %1323 = vmatprep.subr.mxu0 0.0
  %1324 = vmatpush1.msra.mxu0 %v33
  %1325 = vmatprep.subr.mxu0 0.0
  %1326 = vmatpush1.msra.mxu0 %v34
  %1327 = vmatprep.subr.mxu0 0.0
  %1328 = vmatpush1.msra.mxu0 %v35
  %1329 = vmatprep.subr.mxu0 0.0
  %1330 = vmatpush1.msra.mxu0 %v36
  %1331 = vmatprep.subr.mxu0 0.0
  %1332 = vmatpush1.msra.mxu0 0.0
  %1333 = vmatprep.subr.mxu0 0.0
  %1334 = vmatpush1.msra.mxu0 0.0
  %1335 = vmatprep.subr.mxu0 0.0
  %1336 = vmatpush1.msra.mxu0 0.0
  %1337 = vmatprep.subr.mxu0 0.0
  %1338 = vmatpush1.msra.mxu0 0.0
  %1339 = vmatprep.subr.mxu0 0.0
  %1340 = vmatpush1.msra.mxu0 0.0
  %1341 = vmatprep.subr.mxu0 0.0
  %1342 = vmatpush1.msra.mxu0 0.0
  %1343 = vmatprep.subr.mxu0 0.0
  %1344 = vmatpush1.msra.mxu0 0.0
  %1345 = vmatprep.subr.mxu0 0.0
  %1346 = vmatpush1.msra.mxu0 0.0
  %1347 = vmatprep.subr.mxu0 0.0
  %1348 = vmatpush1.msra.mxu0 0.0
  %1349 = vmatprep.subr.mxu0 0.0
  %1350 = vmatpush1.msra.mxu0 0.0
  %1351 = vmatprep.subr.mxu0 0.0
  %1352 = vmatpush1.msra.mxu0 0.0
  %1353 = vmatprep.subr.mxu0 0.0
  %1354 = vmatpush1.msra.mxu0 0.0
  %1355 = vmatprep.subr.mxu0 0.0
  %1356 = vmatpush1.msra.mxu0 0.0
  %1357 = vmatprep.subr.mxu0 0.0
  %1358 = vmatpush1.msra.mxu0 0.0
  %1359 = vmatprep.subr.mxu0 0.0
  %1360 = vmatpush1.msra.mxu0 0.0
  %1361 = vmatprep.subr.mxu0 0.0
  %1362 = vmatpush1.msra.mxu0 0.0
  %1363 = vmatprep.subr.mxu0 0.0
  %1364 = vmatpush1.msra.mxu0 0.0
  %1365 = vmatprep.subr.mxu0 0.0
  %1366 = vmatpush1.msra.mxu0 0.0
  %1367 = vmatprep.subr.mxu0 0.0
  %1368 = vmatpush1.msra.mxu0 0.0
  %1369 = vmatprep.subr.mxu0 0.0
  %1370 = vmatpush1.msra.mxu0 0.0
  %1371 = vmatprep.subr.mxu0 0.0
  %1372 = vmatpush1.msra.mxu0 0.0
  %1373 = vmatprep.subr.mxu0 0.0
  %1374 = vmatpush1.msra.mxu0 0.0
  %1375 = vmatprep.subr.mxu0 0.0
  %1376 = vmatpush1.msra.mxu0 0.0
  %1377 = vmatprep.subr.mxu0 0.0
  %1378 = vmatpush1.msra.mxu0 0.0
  %1379 = vmatprep.subr.mxu0 0.0
  %1380 = vmatpush1.msra.mxu0 0.0
  %1381 = vmatprep.subr.mxu0 0.0
  %1382 = vmatpush1.msra.mxu0 0.0
  %1383 = vmatprep.subr.mxu0 0.0
  %1384 = vmatpush1.msra.mxu0 0.0
  %1385 = vmatprep.subr.mxu0 0.0
  %1386 = vmatpush1.msra.mxu0 0.0
  %1387 = vmatprep.mubr.f32.mxu0 0.0
  %1388 = vmatmul.mubr.f32.gmra.mrb[0].mxu0 %v1321
  %v1389 = vpop.f32.mrb[0].mxu0
  %v1390 = vadd.f32 %v1315, %v1389
  %v1391 = vpop.f32.mrb[0].mxu0
  %1392 = vdwg.mxu0
  %v1393 = vadd.f32 %v1390, %v291
  %v1394 = vxor.u32 %v1393, 2147483648
  %v1395 = vmul.f32 %v1394, 1.442695
  %v1396 = vpow.pop %v1395
  %v1397 = vadd.f32 %v1396, 1.0
  %v1398 = vrcp.pop %v1397
  %v1399 = vmul.f32 1.0, %v1398
  %v1400 = vtanh.pop %v1393
  %v1401 = vmul.f32 %v1399, %v1136
  %1403 = vrot.lane.b32.xlu0 %v1400, 64
  %v1404 = vpop.permute.xlu0 %1403
  %v1406 = vmul.f32 %v1399, %v1404
  %1408 = vrot.lane.b32.xlu0 %v1406, 32
  %v1409 = vpop.permute.xlu0 %1408
  %v1411 = vadd.f32 %v1401, %v1409
  %v1412 = vtanh.pop %v1411
  %1414 = vrot.lane.b32.xlu0 %v1412, 64
  %v1415 = vpop.permute.xlu0 %1414
  %v1417 = vmul.f32 %v1399, %v1415
  %vm1418 = vcmp.gt.s32.totalorder %v42, 4
  %1420 = vrot.lane.b32.xlu0 %v1417, 32
  %v1421 = vpop.permute.xlu0 %1420
  %v1423 = vsel %vm1418, %v1421, %v1148
  %s1424 = scalar_lea.vmem %s0, 40
  %v1425 = vld [vmem:[%s1424] sm:$0xff]
  %1426 = vmatprep.subr.mxu0 0.0
  %1427 = vmatpush1.msra.mxu0 %v29
  %1428 = vmatprep.subr.mxu0 0.0
  %1429 = vmatpush1.msra.mxu0 %v30
  %1430 = vmatprep.subr.mxu0 0.0
  %1431 = vmatpush1.msra.mxu0 %v31
  %1432 = vmatprep.subr.mxu0 0.0
  %1433 = vmatpush1.msra.mxu0 %v32
  %1434 = vmatprep.subr.mxu0 0.0
  %1435 = vmatpush1.msra.mxu0 0.0
  %1436 = vmatprep.subr.mxu0 0.0
  %1437 = vmatpush1.msra.mxu0 0.0
  %1438 = vmatprep.subr.mxu0 0.0
  %1439 = vmatpush1.msra.mxu0 0.0
  %1440 = vmatprep.subr.mxu0 0.0
  %1441 = vmatpush1.msra.mxu0 0.0
  %1442 = vmatprep.subr.mxu0 0.0
  %1443 = vmatpush1.msra.mxu0 0.0
  %1444 = vmatprep.subr.mxu0 0.0
  %1445 = vmatpush1.msra.mxu0 0.0
  %1446 = vmatprep.subr.mxu0 0.0
  %1447 = vmatpush1.msra.mxu0 0.0
  %1448 = vmatprep.subr.mxu0 0.0
  %1449 = vmatpush1.msra.mxu0 0.0
  %1450 = vmatprep.subr.mxu0 0.0
  %1451 = vmatpush1.msra.mxu0 0.0
  %1452 = vmatprep.subr.mxu0 0.0
  %1453 = vmatpush1.msra.mxu0 0.0
  %1454 = vmatprep.subr.mxu0 0.0
  %1455 = vmatpush1.msra.mxu0 0.0
  %1456 = vmatprep.subr.mxu0 0.0
  %1457 = vmatpush1.msra.mxu0 0.0
  %1458 = vmatprep.subr.mxu0 0.0
  %1459 = vmatpush1.msra.mxu0 0.0
  %1460 = vmatprep.subr.mxu0 0.0
  %1461 = vmatpush1.msra.mxu0 0.0
  %1462 = vmatprep.subr.mxu0 0.0
  %1463 = vmatpush1.msra.mxu0 0.0
  %1464 = vmatprep.subr.mxu0 0.0
  %1465 = vmatpush1.msra.mxu0 0.0
  %1466 = vmatprep.subr.mxu0 0.0
  %1467 = vmatpush1.msra.mxu0 0.0
  %1468 = vmatprep.subr.mxu0 0.0
  %1469 = vmatpush1.msra.mxu0 0.0
  %1470 = vmatprep.subr.mxu0 0.0
  %1471 = vmatpush1.msra.mxu0 0.0
  %1472 = vmatprep.subr.mxu0 0.0
  %1473 = vmatpush1.msra.mxu0 0.0
  %1474 = vmatprep.subr.mxu0 0.0
  %1475 = vmatpush1.msra.mxu0 0.0
  %1476 = vmatprep.subr.mxu0 0.0
  %1477 = vmatpush1.msra.mxu0 0.0
  %1478 = vmatprep.subr.mxu0 0.0
  %1479 = vmatpush1.msra.mxu0 0.0
  %1480 = vmatprep.subr.mxu0 0.0
  %1481 = vmatpush1.msra.mxu0 0.0
  %1482 = vmatprep.subr.mxu0 0.0
  %1483 = vmatpush1.msra.mxu0 0.0
  %1484 = vmatprep.subr.mxu0 0.0
  %1485 = vmatpush1.msra.mxu0 0.0
  %1486 = vmatprep.subr.mxu0 0.0
  %1487 = vmatpush1.msra.mxu0 0.0
  %1488 = vmatprep.subr.mxu0 0.0
  %1489 = vmatpush1.msra.mxu0 0.0
  %1490 = vmatprep.mubr.f32.mxu0 0.0
  %1491 = vmatmul.mubr.f32.gmra.mrb[0].mxu0 %v1321
  %v1492 = vpop.f32.mrb[0].mxu0
  %v1493 = vadd.f32 %v1425, %v1492
  %v1494 = vpop.f32.mrb[0].mxu0
  %1495 = vdwg.mxu0
  %v1496 = vxor.u32 %v1493, 2147483648
  %v1497 = vmul.f32 %v1496, 1.442695
  %v1498 = vpow.pop %v1497
  %v1499 = vadd.f32 %v1498, 1.0
  %v1500 = vrcp.pop %v1499
  %v1501 = vmul.f32 1.0, %v1500
  %v1502 = vtanh.pop %v1493
  %v1503 = vmul.f32 %v1501, %v1238
  %1505 = vrot.lane.b32.xlu0 %v1502, 64
  %v1506 = vpop.permute.xlu0 %1505
  %v1508 = vmul.f32 %v1501, %v1506
  %1510 = vrot.lane.b32.xlu0 %v1508, 32
  %v1511 = vpop.permute.xlu0 %1510
  %v1513 = vadd.f32 %v1503, %v1511
  %v1514 = vtanh.pop %v1513
  %1516 = vrot.lane.b32.xlu0 %v1514, 64
  %v1517 = vpop.permute.xlu0 %1516
  %v1519 = vmul.f32 %v1501, %v1517
  %v1521 = vsel %vm44, %v1423, 0
  %1523 = vmatprep.subr.mxu0 0.0
  %1524 = vmatpush1.msra.mxu0 %v37
  %1525 = vmatprep.subr.mxu0 0.0
  %1526 = vmatpush1.msra.mxu0 %v38
  %1527 = vmatprep.subr.mxu0 0.0
  %1528 = vmatpush1.msra.mxu0 %v39
  %1529 = vmatprep.subr.mxu0 0.0
  %1530 = vmatpush1.msra.mxu0 %v40
  %1531 = vmatprep.subr.mxu0 0.0
  %1532 = vmatpush1.msra.mxu0 0.0
  %1533 = vmatprep.subr.mxu0 0.0
  %1534 = vmatpush1.msra.mxu0 0.0
  %1535 = vmatprep.subr.mxu0 0.0
  %1536 = vmatpush1.msra.mxu0 0.0
  %1537 = vmatprep.subr.mxu0 0.0
  %1538 = vmatpush1.msra.mxu0 0.0
  %1539 = vmatprep.subr.mxu0 0.0
  %1540 = vmatpush1.msra.mxu0 0.0
  %1541 = vmatprep.subr.mxu0 0.0
  %1542 = vmatpush1.msra.mxu0 0.0
  %1543 = vmatprep.subr.mxu0 0.0
  %1544 = vmatpush1.msra.mxu0 0.0
  %1545 = vmatprep.subr.mxu0 0.0
  %1546 = vmatpush1.msra.mxu0 0.0
  %1547 = vmatprep.subr.mxu0 0.0
  %1548 = vmatpush1.msra.mxu0 0.0
  %1549 = vmatprep.subr.mxu0 0.0
  %1550 = vmatpush1.msra.mxu0 0.0
  %1551 = vmatprep.subr.mxu0 0.0
  %1552 = vmatpush1.msra.mxu0 0.0
  %1553 = vmatprep.subr.mxu0 0.0
  %1554 = vmatpush1.msra.mxu0 0.0
  %1555 = vmatprep.subr.mxu0 0.0
  %1556 = vmatpush1.msra.mxu0 0.0
  %1557 = vmatprep.subr.mxu0 0.0
  %1558 = vmatpush1.msra.mxu0 0.0
  %1559 = vmatprep.subr.mxu0 0.0
  %1560 = vmatpush1.msra.mxu0 0.0
  %1561 = vmatprep.subr.mxu0 0.0
  %1562 = vmatpush1.msra.mxu0 0.0
  %1563 = vmatprep.subr.mxu0 0.0
  %1564 = vmatpush1.msra.mxu0 0.0
  %1565 = vmatprep.subr.mxu0 0.0
  %1566 = vmatpush1.msra.mxu0 0.0
  %1567 = vmatprep.subr.mxu0 0.0
  %1568 = vmatpush1.msra.mxu0 0.0
  %1569 = vmatprep.subr.mxu0 0.0
  %1570 = vmatpush1.msra.mxu0 0.0
  %1571 = vmatprep.subr.mxu0 0.0
  %1572 = vmatpush1.msra.mxu0 0.0
  %1573 = vmatprep.subr.mxu0 0.0
  %1574 = vmatpush1.msra.mxu0 0.0
  %1575 = vmatprep.subr.mxu0 0.0
  %1576 = vmatpush1.msra.mxu0 0.0
  %1577 = vmatprep.subr.mxu0 0.0
  %1578 = vmatpush1.msra.mxu0 0.0
  %1579 = vmatprep.subr.mxu0 0.0
  %1580 = vmatpush1.msra.mxu0 0.0
  %1581 = vmatprep.subr.mxu0 0.0
  %1582 = vmatpush1.msra.mxu0 0.0
  %1583 = vmatprep.subr.mxu0 0.0
  %1584 = vmatpush1.msra.mxu0 0.0
  %1585 = vmatprep.subr.mxu0 0.0
  %1586 = vmatpush1.msra.mxu0 0.0
  %1587 = vmatprep.mubr.f32.mxu0 0.0
  %1588 = vmatmul.mubr.f32.gmra.mrb[0].mxu0 %v1521
  %v1589 = vpop.f32.mrb[0].mxu0
  %v1590 = vadd.f32 0.0, %v1589
  %v1591 = vpop.f32.mrb[0].mxu0
  %1592 = vdwg.mxu0
  %1594 = vrot.lane.b32.xlu0 %v1519, 32
  %v1595 = vpop.permute.xlu0 %1594
  %v1596 = vsel %vm44, %v1595, 0
  %1598 = vmatprep.subr.mxu0 0.0
  %1599 = vmatpush1.msra.mxu0 %v33
  %1600 = vmatprep.subr.mxu0 0.0
  %1601 = vmatpush1.msra.mxu0 %v34
  %1602 = vmatprep.subr.mxu0 0.0
  %1603 = vmatpush1.msra.mxu0 %v35
  %1604 = vmatprep.subr.mxu0 0.0
  %1605 = vmatpush1.msra.mxu0 %v36
  %1606 = vmatprep.subr.mxu0 0.0
  %1607 = vmatpush1.msra.mxu0 0.0
  %1608 = vmatprep.subr.mxu0 0.0
  %1609 = vmatpush1.msra.mxu0 0.0
  %1610 = vmatprep.subr.mxu0 0.0
  %1611 = vmatpush1.msra.mxu0 0.0
  %1612 = vmatprep.subr.mxu0 0.0
  %1613 = vmatpush1.msra.mxu0 0.0
  %1614 = vmatprep.subr.mxu0 0.0
  %1615 = vmatpush1.msra.mxu0 0.0
  %1616 = vmatprep.subr.mxu0 0.0
  %1617 = vmatpush1.msra.mxu0 0.0
  %1618 = vmatprep.subr.mxu0 0.0
  %1619 = vmatpush1.msra.mxu0 0.0
  %1620 = vmatprep.subr.mxu0 0.0
  %1621 = vmatpush1.msra.mxu0 0.0
  %1622 = vmatprep.subr.mxu0 0.0
  %1623 = vmatpush1.msra.mxu0 0.0
  %1624 = vmatprep.subr.mxu0 0.0
  %1625 = vmatpush1.msra.mxu0 0.0
  %1626 = vmatprep.subr.mxu0 0.0
  %1627 = vmatpush1.msra.mxu0 0.0
  %1628 = vmatprep.subr.mxu0 0.0
  %1629 = vmatpush1.msra.mxu0 0.0
  %1630 = vmatprep.subr.mxu0 0.0
  %1631 = vmatpush1.msra.mxu0 0.0
  %1632 = vmatprep.subr.mxu0 0.0
  %1633 = vmatpush1.msra.mxu0 0.0
  %1634 = vmatprep.subr.mxu0 0.0
  %1635 = vmatpush1.msra.mxu0 0.0
  %1636 = vmatprep.subr.mxu0 0.0
  %1637 = vmatpush1.msra.mxu0 0.0
  %1638 = vmatprep.subr.mxu0 0.0
  %1639 = vmatpush1.msra.mxu0 0.0
  %1640 = vmatprep.subr.mxu0 0.0
  %1641 = vmatpush1.msra.mxu0 0.0
  %1642 = vmatprep.subr.mxu0 0.0
  %1643 = vmatpush1.msra.mxu0 0.0
  %1644 = vmatprep.subr.mxu0 0.0
  %1645 = vmatpush1.msra.mxu0 0.0
  %1646 = vmatprep.subr.mxu0 0.0
  %1647 = vmatpush1.msra.mxu0 0.0
  %1648 = vmatprep.subr.mxu0 0.0
  %1649 = vmatpush1.msra.mxu0 0.0
  %1650 = vmatprep.subr.mxu0 0.0
  %1651 = vmatpush1.msra.mxu0 0.0
  %1652 = vmatprep.subr.mxu0 0.0
  %1653 = vmatpush1.msra.mxu0 0.0
  %1654 = vmatprep.subr.mxu0 0.0
  %1655 = vmatpush1.msra.mxu0 0.0
  %1656 = vmatprep.subr.mxu0 0.0
  %1657 = vmatpush1.msra.mxu0 0.0
  %1658 = vmatprep.subr.mxu0 0.0
  %1659 = vmatpush1.msra.mxu0 0.0
  %1660 = vmatprep.subr.mxu0 0.0
  %1661 = vmatpush1.msra.mxu0 0.0
  %1662 = vmatprep.mubr.f32.mxu0 0.0
  %1663 = vmatmul.mubr.f32.gmra.mrb[0].mxu0 %v1596
  %v1664 = vpop.f32.mrb[0].mxu0
  %v1665 = vadd.f32 %v1590, %v1664
  %v1666 = vpop.f32.mrb[0].mxu0
  %1667 = vdwg.mxu0
  %v1668 = vadd.f32 %v1665, %v291
  %v1669 = vxor.u32 %v1668, 2147483648
  %v1670 = vmul.f32 %v1669, 1.442695
  %v1671 = vpow.pop %v1670
  %v1672 = vadd.f32 %v1671, 1.0
  %v1673 = vrcp.pop %v1672
  %v1674 = vmul.f32 1.0, %v1673
  %v1675 = vtanh.pop %v1668
  %v1676 = vmul.f32 %v1674, %v1411
  %1678 = vrot.lane.b32.xlu0 %v1675, 64
  %v1679 = vpop.permute.xlu0 %1678
  %v1681 = vmul.f32 %v1674, %v1679
  %1683 = vrot.lane.b32.xlu0 %v1681, 32
  %v1684 = vpop.permute.xlu0 %1683
  %v1686 = vadd.f32 %v1676, %v1684
  %v1687 = vtanh.pop %v1686
  %1689 = vrot.lane.b32.xlu0 %v1687, 64
  %v1690 = vpop.permute.xlu0 %1689
  %v1692 = vmul.f32 %v1674, %v1690
  %vm1693 = vcmp.gt.s32.totalorder %v42, 5
  %1695 = vrot.lane.b32.xlu0 %v1692, 32
  %v1696 = vpop.permute.xlu0 %1695
  %v1698 = vsel %vm1693, %v1696, %v1423
  %s1699 = scalar_lea.vmem %s0, 48
  %v1700 = vld [vmem:[%s1699] sm:$0xff]
  %1701 = vmatprep.subr.mxu0 0.0
  %1702 = vmatpush1.msra.mxu0 %v29
  %1703 = vmatprep.subr.mxu0 0.0
  %1704 = vmatpush1.msra.mxu0 %v30
  %1705 = vmatprep.subr.mxu0 0.0
  %1706 = vmatpush1.msra.mxu0 %v31
  %1707 = vmatprep.subr.mxu0 0.0
  %1708 = vmatpush1.msra.mxu0 %v32
  %1709 = vmatprep.subr.mxu0 0.0
  %1710 = vmatpush1.msra.mxu0 0.0
  %1711 = vmatprep.subr.mxu0 0.0
  %1712 = vmatpush1.msra.mxu0 0.0
  %1713 = vmatprep.subr.mxu0 0.0
  %1714 = vmatpush1.msra.mxu0 0.0
  %1715 = vmatprep.subr.mxu0 0.0
  %1716 = vmatpush1.msra.mxu0 0.0
  %1717 = vmatprep.subr.mxu0 0.0
  %1718 = vmatpush1.msra.mxu0 0.0
  %1719 = vmatprep.subr.mxu0 0.0
  %1720 = vmatpush1.msra.mxu0 0.0
  %1721 = vmatprep.subr.mxu0 0.0
  %1722 = vmatpush1.msra.mxu0 0.0
  %1723 = vmatprep.subr.mxu0 0.0
  %1724 = vmatpush1.msra.mxu0 0.0
  %1725 = vmatprep.subr.mxu0 0.0
  %1726 = vmatpush1.msra.mxu0 0.0
  %1727 = vmatprep.subr.mxu0 0.0
  %1728 = vmatpush1.msra.mxu0 0.0
  %1729 = vmatprep.subr.mxu0 0.0
  %1730 = vmatpush1.msra.mxu0 0.0
  %1731 = vmatprep.subr.mxu0 0.0
  %1732 = vmatpush1.msra.mxu0 0.0
  %1733 = vmatprep.subr.mxu0 0.0
  %1734 = vmatpush1.msra.mxu0 0.0
  %1735 = vmatprep.subr.mxu0 0.0
  %1736 = vmatpush1.msra.mxu0 0.0
  %1737 = vmatprep.subr.mxu0 0.0
  %1738 = vmatpush1.msra.mxu0 0.0
  %1739 = vmatprep.subr.mxu0 0.0
  %1740 = vmatpush1.msra.mxu0 0.0
  %1741 = vmatprep.subr.mxu0 0.0
  %1742 = vmatpush1.msra.mxu0 0.0
  %1743 = vmatprep.subr.mxu0 0.0
  %1744 = vmatpush1.msra.mxu0 0.0
  %1745 = vmatprep.subr.mxu0 0.0
  %1746 = vmatpush1.msra.mxu0 0.0
  %1747 = vmatprep.subr.mxu0 0.0
  %1748 = vmatpush1.msra.mxu0 0.0
  %1749 = vmatprep.subr.mxu0 0.0
  %1750 = vmatpush1.msra.mxu0 0.0
  %1751 = vmatprep.subr.mxu0 0.0
  %1752 = vmatpush1.msra.mxu0 0.0
  %1753 = vmatprep.subr.mxu0 0.0
  %1754 = vmatpush1.msra.mxu0 0.0
  %1755 = vmatprep.subr.mxu0 0.0
  %1756 = vmatpush1.msra.mxu0 0.0
  %1757 = vmatprep.subr.mxu0 0.0
  %1758 = vmatpush1.msra.mxu0 0.0
  %1759 = vmatprep.subr.mxu0 0.0
  %1760 = vmatpush1.msra.mxu0 0.0
  %1761 = vmatprep.subr.mxu0 0.0
  %1762 = vmatpush1.msra.mxu0 0.0
  %1763 = vmatprep.subr.mxu0 0.0
  %1764 = vmatpush1.msra.mxu0 0.0
  %1765 = vmatprep.mubr.f32.mxu0 0.0
  %1766 = vmatmul.mubr.f32.gmra.mrb[0].mxu0 %v1596
  %v1767 = vpop.f32.mrb[0].mxu0
  %v1768 = vadd.f32 %v1700, %v1767
  %v1769 = vpop.f32.mrb[0].mxu0
  %1770 = vdwg.mxu0
  %v1771 = vxor.u32 %v1768, 2147483648
  %v1772 = vmul.f32 %v1771, 1.442695
  %v1773 = vpow.pop %v1772
  %v1774 = vadd.f32 %v1773, 1.0
  %v1775 = vrcp.pop %v1774
  %v1776 = vmul.f32 1.0, %v1775
  %v1777 = vtanh.pop %v1768
  %v1778 = vmul.f32 %v1776, %v1513
  %1780 = vrot.lane.b32.xlu0 %v1777, 64
  %v1781 = vpop.permute.xlu0 %1780
  %v1783 = vmul.f32 %v1776, %v1781
  %1785 = vrot.lane.b32.xlu0 %v1783, 32
  %v1786 = vpop.permute.xlu0 %1785
  %v1788 = vadd.f32 %v1778, %v1786
  %v1789 = vtanh.pop %v1788
  %1791 = vrot.lane.b32.xlu0 %v1789, 64
  %v1792 = vpop.permute.xlu0 %1791
  %v1794 = vmul.f32 %v1776, %v1792
  %v1796 = vsel %vm44, %v1698, 0
  %1798 = vmatprep.subr.mxu0 0.0
  %1799 = vmatpush1.msra.mxu0 %v37
  %1800 = vmatprep.subr.mxu0 0.0
  %1801 = vmatpush1.msra.mxu0 %v38
  %1802 = vmatprep.subr.mxu0 0.0
  %1803 = vmatpush1.msra.mxu0 %v39
  %1804 = vmatprep.subr.mxu0 0.0
  %1805 = vmatpush1.msra.mxu0 %v40
  %1806 = vmatprep.subr.mxu0 0.0
  %1807 = vmatpush1.msra.mxu0 0.0
  %1808 = vmatprep.subr.mxu0 0.0
  %1809 = vmatpush1.msra.mxu0 0.0
  %1810 = vmatprep.subr.mxu0 0.0
  %1811 = vmatpush1.msra.mxu0 0.0
  %1812 = vmatprep.subr.mxu0 0.0
  %1813 = vmatpush1.msra.mxu0 0.0
  %1814 = vmatprep.subr.mxu0 0.0
  %1815 = vmatpush1.msra.mxu0 0.0
  %1816 = vmatprep.subr.mxu0 0.0
  %1817 = vmatpush1.msra.mxu0 0.0
  %1818 = vmatprep.subr.mxu0 0.0
  %1819 = vmatpush1.msra.mxu0 0.0
  %1820 = vmatprep.subr.mxu0 0.0
  %1821 = vmatpush1.msra.mxu0 0.0
  %1822 = vmatprep.subr.mxu0 0.0
  %1823 = vmatpush1.msra.mxu0 0.0
  %1824 = vmatprep.subr.mxu0 0.0
  %1825 = vmatpush1.msra.mxu0 0.0
  %1826 = vmatprep.subr.mxu0 0.0
  %1827 = vmatpush1.msra.mxu0 0.0
  %1828 = vmatprep.subr.mxu0 0.0
  %1829 = vmatpush1.msra.mxu0 0.0
  %1830 = vmatprep.subr.mxu0 0.0
  %1831 = vmatpush1.msra.mxu0 0.0
  %1832 = vmatprep.subr.mxu0 0.0
  %1833 = vmatpush1.msra.mxu0 0.0
  %1834 = vmatprep.subr.mxu0 0.0
  %1835 = vmatpush1.msra.mxu0 0.0
  %1836 = vmatprep.subr.mxu0 0.0
  %1837 = vmatpush1.msra.mxu0 0.0
  %1838 = vmatprep.subr.mxu0 0.0
  %1839 = vmatpush1.msra.mxu0 0.0
  %1840 = vmatprep.subr.mxu0 0.0
  %1841 = vmatpush1.msra.mxu0 0.0
  %1842 = vmatprep.subr.mxu0 0.0
  %1843 = vmatpush1.msra.mxu0 0.0
  %1844 = vmatprep.subr.mxu0 0.0
  %1845 = vmatpush1.msra.mxu0 0.0
  %1846 = vmatprep.subr.mxu0 0.0
  %1847 = vmatpush1.msra.mxu0 0.0
  %1848 = vmatprep.subr.mxu0 0.0
  %1849 = vmatpush1.msra.mxu0 0.0
  %1850 = vmatprep.subr.mxu0 0.0
  %1851 = vmatpush1.msra.mxu0 0.0
  %1852 = vmatprep.subr.mxu0 0.0
  %1853 = vmatpush1.msra.mxu0 0.0
  %1854 = vmatprep.subr.mxu0 0.0
  %1855 = vmatpush1.msra.mxu0 0.0
  %1856 = vmatprep.subr.mxu0 0.0
  %1857 = vmatpush1.msra.mxu0 0.0
  %1858 = vmatprep.subr.mxu0 0.0
  %1859 = vmatpush1.msra.mxu0 0.0
  %1860 = vmatprep.subr.mxu0 0.0
  %1861 = vmatpush1.msra.mxu0 0.0
  %1862 = vmatprep.mubr.f32.mxu0 0.0
  %1863 = vmatmul.mubr.f32.gmra.mrb[0].mxu0 %v1796
  %v1864 = vpop.f32.mrb[0].mxu0
  %v1865 = vadd.f32 0.0, %v1864
  %v1866 = vpop.f32.mrb[0].mxu0
  %1867 = vdwg.mxu0
  %1869 = vrot.lane.b32.xlu0 %v1794, 32
  %v1870 = vpop.permute.xlu0 %1869
  %v1871 = vsel %vm44, %v1870, 0
  %1873 = vmatprep.subr.mxu0 0.0
  %1874 = vmatpush1.msra.mxu0 %v33
  %1875 = vmatprep.subr.mxu0 0.0
  %1876 = vmatpush1.msra.mxu0 %v34
  %1877 = vmatprep.subr.mxu0 0.0
  %1878 = vmatpush1.msra.mxu0 %v35
  %1879 = vmatprep.subr.mxu0 0.0
  %1880 = vmatpush1.msra.mxu0 %v36
  %1881 = vmatprep.subr.mxu0 0.0
  %1882 = vmatpush1.msra.mxu0 0.0
  %1883 = vmatprep.subr.mxu0 0.0
  %1884 = vmatpush1.msra.mxu0 0.0
  %1885 = vmatprep.subr.mxu0 0.0
  %1886 = vmatpush1.msra.mxu0 0.0
  %1887 = vmatprep.subr.mxu0 0.0
  %1888 = vmatpush1.msra.mxu0 0.0
  %1889 = vmatprep.subr.mxu0 0.0
  %1890 = vmatpush1.msra.mxu0 0.0
  %1891 = vmatprep.subr.mxu0 0.0
  %1892 = vmatpush1.msra.mxu0 0.0
  %1893 = vmatprep.subr.mxu0 0.0
  %1894 = vmatpush1.msra.mxu0 0.0
  %1895 = vmatprep.subr.mxu0 0.0
  %1896 = vmatpush1.msra.mxu0 0.0
  %1897 = vmatprep.subr.mxu0 0.0
  %1898 = vmatpush1.msra.mxu0 0.0
  %1899 = vmatprep.subr.mxu0 0.0
  %1900 = vmatpush1.msra.mxu0 0.0
  %1901 = vmatprep.subr.mxu0 0.0
  %1902 = vmatpush1.msra.mxu0 0.0
  %1903 = vmatprep.subr.mxu0 0.0
  %1904 = vmatpush1.msra.mxu0 0.0
  %1905 = vmatprep.subr.mxu0 0.0
  %1906 = vmatpush1.msra.mxu0 0.0
  %1907 = vmatprep.subr.mxu0 0.0
  %1908 = vmatpush1.msra.mxu0 0.0
  %1909 = vmatprep.subr.mxu0 0.0
  %1910 = vmatpush1.msra.mxu0 0.0
  %1911 = vmatprep.subr.mxu0 0.0
  %1912 = vmatpush1.msra.mxu0 0.0
  %1913 = vmatprep.subr.mxu0 0.0
  %1914 = vmatpush1.msra.mxu0 0.0
  %1915 = vmatprep.subr.mxu0 0.0
  %1916 = vmatpush1.msra.mxu0 0.0
  %1917 = vmatprep.subr.mxu0 0.0
  %1918 = vmatpush1.msra.mxu0 0.0
  %1919 = vmatprep.subr.mxu0 0.0
  %1920 = vmatpush1.msra.mxu0 0.0
  %1921 = vmatprep.subr.mxu0 0.0
  %1922 = vmatpush1.msra.mxu0 0.0
  %1923 = vmatprep.subr.mxu0 0.0
  %1924 = vmatpush1.msra.mxu0 0.0
  %1925 = vmatprep.subr.mxu0 0.0
  %1926 = vmatpush1.msra.mxu0 0.0
  %1927 = vmatprep.subr.mxu0 0.0
  %1928 = vmatpush1.msra.mxu0 0.0
  %1929 = vmatprep.subr.mxu0 0.0
  %1930 = vmatpush1.msra.mxu0 0.0
  %1931 = vmatprep.subr.mxu0 0.0
  %1932 = vmatpush1.msra.mxu0 0.0
  %1933 = vmatprep.subr.mxu0 0.0
  %1934 = vmatpush1.msra.mxu0 0.0
  %1935 = vmatprep.subr.mxu0 0.0
  %1936 = vmatpush1.msra.mxu0 0.0
  %1937 = vmatprep.mubr.f32.mxu0 0.0
  %1938 = vmatmul.mubr.f32.gmra.mrb[0].mxu0 %v1871
  %v1939 = vpop.f32.mrb[0].mxu0
  %v1940 = vadd.f32 %v1865, %v1939
  %v1941 = vpop.f32.mrb[0].mxu0
  %1942 = vdwg.mxu0
  %v1943 = vadd.f32 %v1940, %v291
  %v1944 = vxor.u32 %v1943, 2147483648
  %v1945 = vmul.f32 %v1944, 1.442695
  %v1946 = vpow.pop %v1945
  %v1947 = vadd.f32 %v1946, 1.0
  %v1948 = vrcp.pop %v1947
  %v1949 = vmul.f32 1.0, %v1948
  %v1950 = vtanh.pop %v1943
  %v1951 = vmul.f32 %v1949, %v1686
  %1953 = vrot.lane.b32.xlu0 %v1950, 64
  %v1954 = vpop.permute.xlu0 %1953
  %v1956 = vmul.f32 %v1949, %v1954
  %1958 = vrot.lane.b32.xlu0 %v1956, 32
  %v1959 = vpop.permute.xlu0 %1958
  %v1961 = vadd.f32 %v1951, %v1959
  %v1962 = vtanh.pop %v1961
  %1964 = vrot.lane.b32.xlu0 %v1962, 64
  %v1965 = vpop.permute.xlu0 %1964
  %v1967 = vmul.f32 %v1949, %v1965
  %vm1968 = vcmp.gt.s32.totalorder %v42, 6
  %1970 = vrot.lane.b32.xlu0 %v1967, 32
  %v1971 = vpop.permute.xlu0 %1970
  %v1973 = vsel %vm1968, %v1971, %v1698
  %s1974 = scalar_lea.vmem %s0, 56
  %v1975 = vld [vmem:[%s1974] sm:$0xff]
  %1976 = vmatprep.subr.mxu0 0.0
  %1977 = vmatpush1.msra.mxu0 %v29
  %1978 = vmatprep.subr.mxu0 0.0
  %1979 = vmatpush1.msra.mxu0 %v30
  %1980 = vmatprep.subr.mxu0 0.0
  %1981 = vmatpush1.msra.mxu0 %v31
  %1982 = vmatprep.subr.mxu0 0.0
  %1983 = vmatpush1.msra.mxu0 %v32
  %1984 = vmatprep.subr.mxu0 0.0
  %1985 = vmatpush1.msra.mxu0 0.0
  %1986 = vmatprep.subr.mxu0 0.0
  %1987 = vmatpush1.msra.mxu0 0.0
  %1988 = vmatprep.subr.mxu0 0.0
  %1989 = vmatpush1.msra.mxu0 0.0
  %1990 = vmatprep.subr.mxu0 0.0
  %1991 = vmatpush1.msra.mxu0 0.0
  %1992 = vmatprep.subr.mxu0 0.0
  %1993 = vmatpush1.msra.mxu0 0.0
  %1994 = vmatprep.subr.mxu0 0.0
  %1995 = vmatpush1.msra.mxu0 0.0
  %1996 = vmatprep.subr.mxu0 0.0
  %1997 = vmatpush1.msra.mxu0 0.0
  %1998 = vmatprep.subr.mxu0 0.0
  %1999 = vmatpush1.msra.mxu0 0.0
  %2000 = vmatprep.subr.mxu0 0.0
  %2001 = vmatpush1.msra.mxu0 0.0
  %2002 = vmatprep.subr.mxu0 0.0
  %2003 = vmatpush1.msra.mxu0 0.0
  %2004 = vmatprep.subr.mxu0 0.0
  %2005 = vmatpush1.msra.mxu0 0.0
  %2006 = vmatprep.subr.mxu0 0.0
  %2007 = vmatpush1.msra.mxu0 0.0
  %2008 = vmatprep.subr.mxu0 0.0
  %2009 = vmatpush1.msra.mxu0 0.0
  %2010 = vmatprep.subr.mxu0 0.0
  %2011 = vmatpush1.msra.mxu0 0.0
  %2012 = vmatprep.subr.mxu0 0.0
  %2013 = vmatpush1.msra.mxu0 0.0
  %2014 = vmatprep.subr.mxu0 0.0
  %2015 = vmatpush1.msra.mxu0 0.0
  %2016 = vmatprep.subr.mxu0 0.0
  %2017 = vmatpush1.msra.mxu0 0.0
  %2018 = vmatprep.subr.mxu0 0.0
  %2019 = vmatpush1.msra.mxu0 0.0
  %2020 = vmatprep.subr.mxu0 0.0
  %2021 = vmatpush1.msra.mxu0 0.0
  %2022 = vmatprep.subr.mxu0 0.0
  %2023 = vmatpush1.msra.mxu0 0.0
  %2024 = vmatprep.subr.mxu0 0.0
  %2025 = vmatpush1.msra.mxu0 0.0
  %2026 = vmatprep.subr.mxu0 0.0
  %2027 = vmatpush1.msra.mxu0 0.0
  %2028 = vmatprep.subr.mxu0 0.0
  %2029 = vmatpush1.msra.mxu0 0.0
  %2030 = vmatprep.subr.mxu0 0.0
  %2031 = vmatpush1.msra.mxu0 0.0
  %2032 = vmatprep.subr.mxu0 0.0
  %2033 = vmatpush1.msra.mxu0 0.0
  %2034 = vmatprep.subr.mxu0 0.0
  %2035 = vmatpush1.msra.mxu0 0.0
  %2036 = vmatprep.subr.mxu0 0.0
  %2037 = vmatpush1.msra.mxu0 0.0
  %2038 = vmatprep.subr.mxu0 0.0
  %2039 = vmatpush1.msra.mxu0 0.0
  %2040 = vmatprep.mubr.f32.mxu0 0.0
  %2041 = vmatmul.mubr.f32.gmra.mrb[0].mxu0 %v1871
  %v2042 = vpop.f32.mrb[0].mxu0
  %v2043 = vadd.f32 %v1975, %v2042
  %v2044 = vpop.f32.mrb[0].mxu0
  %2045 = vdwg.mxu0
  %v2046 = vxor.u32 %v2043, 2147483648
  %v2047 = vmul.f32 %v2046, 1.442695
  %v2048 = vpow.pop %v2047
  %v2049 = vadd.f32 %v2048, 1.0
  %v2050 = vrcp.pop %v2049
  %v2051 = vmul.f32 1.0, %v2050
  %v2052 = vtanh.pop %v2043
  %v2053 = vmul.f32 %v2051, %v1788
  %2055 = vrot.lane.b32.xlu0 %v2052, 64
  %v2056 = vpop.permute.xlu0 %2055
  %v2058 = vmul.f32 %v2051, %v2056
  %2060 = vrot.lane.b32.xlu0 %v2058, 32
  %v2061 = vpop.permute.xlu0 %2060
  %v2063 = vadd.f32 %v2053, %v2061
  %v2064 = vtanh.pop %v2063
  %2066 = vrot.lane.b32.xlu0 %v2064, 64
  %v2067 = vpop.permute.xlu0 %2066
  %v2069 = vmul.f32 %v2051, %v2067
  %v2071 = vsel %vm44, %v1973, 0
  %2073 = vmatprep.subr.mxu0 0.0
  %2074 = vmatpush1.msra.mxu0 %v37
  %2075 = vmatprep.subr.mxu0 0.0
  %2076 = vmatpush1.msra.mxu0 %v38
  %2077 = vmatprep.subr.mxu0 0.0
  %2078 = vmatpush1.msra.mxu0 %v39
  %2079 = vmatprep.subr.mxu0 0.0
  %2080 = vmatpush1.msra.mxu0 %v40
  %2081 = vmatprep.subr.mxu0 0.0
  %2082 = vmatpush1.msra.mxu0 0.0
  %2083 = vmatprep.subr.mxu0 0.0
  %2084 = vmatpush1.msra.mxu0 0.0
  %2085 = vmatprep.subr.mxu0 0.0
  %2086 = vmatpush1.msra.mxu0 0.0
  %2087 = vmatprep.subr.mxu0 0.0
  %2088 = vmatpush1.msra.mxu0 0.0
  %2089 = vmatprep.subr.mxu0 0.0
  %2090 = vmatpush1.msra.mxu0 0.0
  %2091 = vmatprep.subr.mxu0 0.0
  %2092 = vmatpush1.msra.mxu0 0.0
  %2093 = vmatprep.subr.mxu0 0.0
  %2094 = vmatpush1.msra.mxu0 0.0
  %2095 = vmatprep.subr.mxu0 0.0
  %2096 = vmatpush1.msra.mxu0 0.0
  %2097 = vmatprep.subr.mxu0 0.0
  %2098 = vmatpush1.msra.mxu0 0.0
  %2099 = vmatprep.subr.mxu0 0.0
  %2100 = vmatpush1.msra.mxu0 0.0
  %2101 = vmatprep.subr.mxu0 0.0
  %2102 = vmatpush1.msra.mxu0 0.0
  %2103 = vmatprep.subr.mxu0 0.0
  %2104 = vmatpush1.msra.mxu0 0.0
  %2105 = vmatprep.subr.mxu0 0.0
  %2106 = vmatpush1.msra.mxu0 0.0
  %2107 = vmatprep.subr.mxu0 0.0
  %2108 = vmatpush1.msra.mxu0 0.0
  %2109 = vmatprep.subr.mxu0 0.0
  %2110 = vmatpush1.msra.mxu0 0.0
  %2111 = vmatprep.subr.mxu0 0.0
  %2112 = vmatpush1.msra.mxu0 0.0
  %2113 = vmatprep.subr.mxu0 0.0
  %2114 = vmatpush1.msra.mxu0 0.0
  %2115 = vmatprep.subr.mxu0 0.0
  %2116 = vmatpush1.msra.mxu0 0.0
  %2117 = vmatprep.subr.mxu0 0.0
  %2118 = vmatpush1.msra.mxu0 0.0
  %2119 = vmatprep.subr.mxu0 0.0
  %2120 = vmatpush1.msra.mxu0 0.0
  %2121 = vmatprep.subr.mxu0 0.0
  %2122 = vmatpush1.msra.mxu0 0.0
  %2123 = vmatprep.subr.mxu0 0.0
  %2124 = vmatpush1.msra.mxu0 0.0
  %2125 = vmatprep.subr.mxu0 0.0
  %2126 = vmatpush1.msra.mxu0 0.0
  %2127 = vmatprep.subr.mxu0 0.0
  %2128 = vmatpush1.msra.mxu0 0.0
  %2129 = vmatprep.subr.mxu0 0.0
  %2130 = vmatpush1.msra.mxu0 0.0
  %2131 = vmatprep.subr.mxu0 0.0
  %2132 = vmatpush1.msra.mxu0 0.0
  %2133 = vmatprep.subr.mxu0 0.0
  %2134 = vmatpush1.msra.mxu0 0.0
  %2135 = vmatprep.subr.mxu0 0.0
  %2136 = vmatpush1.msra.mxu0 0.0
  %2137 = vmatprep.mubr.f32.mxu0 0.0
  %2138 = vmatmul.mubr.f32.gmra.mrb[0].mxu0 %v2071
  %v2139 = vpop.f32.mrb[0].mxu0
  %v2140 = vadd.f32 0.0, %v2139
  %v2141 = vpop.f32.mrb[0].mxu0
  %2142 = vdwg.mxu0
  %2144 = vrot.lane.b32.xlu0 %v2069, 32
  %v2145 = vpop.permute.xlu0 %2144
  %v2146 = vsel %vm44, %v2145, 0
  %2148 = vmatprep.subr.mxu0 0.0
  %2149 = vmatpush1.msra.mxu0 %v33
  %2150 = vmatprep.subr.mxu0 0.0
  %2151 = vmatpush1.msra.mxu0 %v34
  %2152 = vmatprep.subr.mxu0 0.0
  %2153 = vmatpush1.msra.mxu0 %v35
  %2154 = vmatprep.subr.mxu0 0.0
  %2155 = vmatpush1.msra.mxu0 %v36
  %2156 = vmatprep.subr.mxu0 0.0
  %2157 = vmatpush1.msra.mxu0 0.0
  %2158 = vmatprep.subr.mxu0 0.0
  %2159 = vmatpush1.msra.mxu0 0.0
  %2160 = vmatprep.subr.mxu0 0.0
  %2161 = vmatpush1.msra.mxu0 0.0
  %2162 = vmatprep.subr.mxu0 0.0
  %2163 = vmatpush1.msra.mxu0 0.0
  %2164 = vmatprep.subr.mxu0 0.0
  %2165 = vmatpush1.msra.mxu0 0.0
  %2166 = vmatprep.subr.mxu0 0.0
  %2167 = vmatpush1.msra.mxu0 0.0
  %2168 = vmatprep.subr.mxu0 0.0
  %2169 = vmatpush1.msra.mxu0 0.0
  %2170 = vmatprep.subr.mxu0 0.0
  %2171 = vmatpush1.msra.mxu0 0.0
  %2172 = vmatprep.subr.mxu0 0.0
  %2173 = vmatpush1.msra.mxu0 0.0
  %2174 = vmatprep.subr.mxu0 0.0
  %2175 = vmatpush1.msra.mxu0 0.0
  %2176 = vmatprep.subr.mxu0 0.0
  %2177 = vmatpush1.msra.mxu0 0.0
  %2178 = vmatprep.subr.mxu0 0.0
  %2179 = vmatpush1.msra.mxu0 0.0
  %2180 = vmatprep.subr.mxu0 0.0
  %2181 = vmatpush1.msra.mxu0 0.0
  %2182 = vmatprep.subr.mxu0 0.0
  %2183 = vmatpush1.msra.mxu0 0.0
  %2184 = vmatprep.subr.mxu0 0.0
  %2185 = vmatpush1.msra.mxu0 0.0
  %2186 = vmatprep.subr.mxu0 0.0
  %2187 = vmatpush1.msra.mxu0 0.0
  %2188 = vmatprep.subr.mxu0 0.0
  %2189 = vmatpush1.msra.mxu0 0.0
  %2190 = vmatprep.subr.mxu0 0.0
  %2191 = vmatpush1.msra.mxu0 0.0
  %2192 = vmatprep.subr.mxu0 0.0
  %2193 = vmatpush1.msra.mxu0 0.0
  %2194 = vmatprep.subr.mxu0 0.0
  %2195 = vmatpush1.msra.mxu0 0.0
  %2196 = vmatprep.subr.mxu0 0.0
  %2197 = vmatpush1.msra.mxu0 0.0
  %2198 = vmatprep.subr.mxu0 0.0
  %2199 = vmatpush1.msra.mxu0 0.0
  %2200 = vmatprep.subr.mxu0 0.0
  %2201 = vmatpush1.msra.mxu0 0.0
  %2202 = vmatprep.subr.mxu0 0.0
  %2203 = vmatpush1.msra.mxu0 0.0
  %2204 = vmatprep.subr.mxu0 0.0
  %2205 = vmatpush1.msra.mxu0 0.0
  %2206 = vmatprep.subr.mxu0 0.0
  %2207 = vmatpush1.msra.mxu0 0.0
  %2208 = vmatprep.subr.mxu0 0.0
  %2209 = vmatpush1.msra.mxu0 0.0
  %2210 = vmatprep.subr.mxu0 0.0
  %2211 = vmatpush1.msra.mxu0 0.0
  %2212 = vmatprep.mubr.f32.mxu0 0.0
  %2213 = vmatmul.mubr.f32.gmra.mrb[0].mxu0 %v2146
  %v2214 = vpop.f32.mrb[0].mxu0
  %v2215 = vadd.f32 %v2140, %v2214
  %v2216 = vpop.f32.mrb[0].mxu0
  %2217 = vdwg.mxu0
  %v2218 = vadd.f32 %v2215, %v291
  %v2219 = vxor.u32 %v2218, 2147483648
  %v2220 = vmul.f32 %v2219, 1.442695
  %v2221 = vpow.pop %v2220
  %v2222 = vadd.f32 %v2221, 1.0
  %v2223 = vrcp.pop %v2222
  %v2224 = vmul.f32 1.0, %v2223
  %v2225 = vtanh.pop %v2218
  %v2226 = vmul.f32 %v2224, %v1961
  %2228 = vrot.lane.b32.xlu0 %v2225, 64
  %v2229 = vpop.permute.xlu0 %2228
  %v2231 = vmul.f32 %v2224, %v2229
  %2233 = vrot.lane.b32.xlu0 %v2231, 32
  %v2234 = vpop.permute.xlu0 %2233
  %v2236 = vadd.f32 %v2226, %v2234
  %v2237 = vtanh.pop %v2236
  %2239 = vrot.lane.b32.xlu0 %v2237, 64
  %v2240 = vpop.permute.xlu0 %2239
  %v2242 = vmul.f32 %v2224, %v2240
  %vm2243 = vcmp.gt.s32.totalorder %v42, 7
  %2245 = vrot.lane.b32.xlu0 %v2242, 32
  %v2246 = vpop.permute.xlu0 %2245
  %v2248 = vsel %vm2243, %v2246, %v1973
  %v2249 = vld [vmem:[%s6] sm:$0xff]
  %v2250 = vld [vmem:[%s6 + $0x8] sm:$0xff]
  %v2251 = vld [vmem:[%s6 + $0x10] sm:$0xff]
  %v2252 = vld [vmem:[%s6 + $0x18] sm:$0xff]
  %v2253 = vld [vmem:[%s7] sm:$0x1]
  %v2255 = vlaneseq
  %v2256 = vshrl.u32 %v2255, 7
  %v2257 = vsub.s32 0, %v2256
  %v2258 = vrot.slane %v2253, %v2257
  %v2261 = vsel %vm44, %v2248, 0
  %2263 = vmatprep.subr.mxu0 0.0
  %2264 = vmatpush1.msra.mxu0 %v2249
  %2265 = vmatprep.subr.mxu0 0.0
  %2266 = vmatpush1.msra.mxu0 %v2250
  %2267 = vmatprep.subr.mxu0 0.0
  %2268 = vmatpush1.msra.mxu0 %v2251
  %2269 = vmatprep.subr.mxu0 0.0
  %2270 = vmatpush1.msra.mxu0 %v2252
  %2271 = vmatprep.subr.mxu0 0.0
  %2272 = vmatpush1.msra.mxu0 0.0
  %2273 = vmatprep.subr.mxu0 0.0
  %2274 = vmatpush1.msra.mxu0 0.0
  %2275 = vmatprep.subr.mxu0 0.0
  %2276 = vmatpush1.msra.mxu0 0.0
  %2277 = vmatprep.subr.mxu0 0.0
  %2278 = vmatpush1.msra.mxu0 0.0
  %2279 = vmatprep.subr.mxu0 0.0
  %2280 = vmatpush1.msra.mxu0 0.0
  %2281 = vmatprep.subr.mxu0 0.0
  %2282 = vmatpush1.msra.mxu0 0.0
  %2283 = vmatprep.subr.mxu0 0.0
  %2284 = vmatpush1.msra.mxu0 0.0
  %2285 = vmatprep.subr.mxu0 0.0
  %2286 = vmatpush1.msra.mxu0 0.0
  %2287 = vmatprep.subr.mxu0 0.0
  %2288 = vmatpush1.msra.mxu0 0.0
  %2289 = vmatprep.subr.mxu0 0.0
  %2290 = vmatpush1.msra.mxu0 0.0
  %2291 = vmatprep.subr.mxu0 0.0
  %2292 = vmatpush1.msra.mxu0 0.0
  %2293 = vmatprep.subr.mxu0 0.0
  %2294 = vmatpush1.msra.mxu0 0.0
  %2295 = vmatprep.subr.mxu0 0.0
  %2296 = vmatpush1.msra.mxu0 0.0
  %2297 = vmatprep.subr.mxu0 0.0
  %2298 = vmatpush1.msra.mxu0 0.0
  %2299 = vmatprep.subr.mxu0 0.0
  %2300 = vmatpush1.msra.mxu0 0.0
  %2301 = vmatprep.subr.mxu0 0.0
  %2302 = vmatpush1.msra.mxu0 0.0
  %2303 = vmatprep.subr.mxu0 0.0
  %2304 = vmatpush1.msra.mxu0 0.0
  %2305 = vmatprep.subr.mxu0 0.0
  %2306 = vmatpush1.msra.mxu0 0.0
  %2307 = vmatprep.subr.mxu0 0.0
  %2308 = vmatpush1.msra.mxu0 0.0
  %2309 = vmatprep.subr.mxu0 0.0
  %2310 = vmatpush1.msra.mxu0 0.0
  %2311 = vmatprep.subr.mxu0 0.0
  %2312 = vmatpush1.msra.mxu0 0.0
  %2313 = vmatprep.subr.mxu0 0.0
  %2314 = vmatpush1.msra.mxu0 0.0
  %2315 = vmatprep.subr.mxu0 0.0
  %2316 = vmatpush1.msra.mxu0 0.0
  %2317 = vmatprep.subr.mxu0 0.0
  %2318 = vmatpush1.msra.mxu0 0.0
  %2319 = vmatprep.subr.mxu0 0.0
  %2320 = vmatpush1.msra.mxu0 0.0
  %2321 = vmatprep.subr.mxu0 0.0
  %2322 = vmatpush1.msra.mxu0 0.0
  %2323 = vmatprep.subr.mxu0 0.0
  %2324 = vmatpush1.msra.mxu0 0.0
  %2325 = vmatprep.subr.mxu0 0.0
  %2326 = vmatpush1.msra.mxu0 0.0
  %2327 = vmatprep.mubr.f32.mxu0 0.0
  %2328 = vmatmul.mubr.f32.gmra.mrb[0].mxu0 %v2261
  %v2329 = vpop.f32.mrb[0].mxu0
  %v2330 = vadd.f32 %v2258, %v2329
  %v2331 = vpop.f32.mrb[0].mxu0
  %2332 = vdwg.mxu0
  %2333 = vst [vmem:[%s8] sm:$0xff] %v2330
  // Predicated region
  $region34: #{lstm_forward.1} parent=0 // pred_check
    _
  $region35: #{lstm_forward.1} parent=0 // pred_check_branch
    %2335 = sbr.rel (0) target = $region37
  $region36: #{lstm_forward.1} parent=0 // pred_region
    _
  $region37: #{lstm_forward.1} parent=0 // pred_fallthru
    _
  // Predicated region
  $region38: #{lstm_forward.1} parent=0 // pred_check
    _
  $region39: #{lstm_forward.1} parent=0 // pred_check_branch
    %2337 = sbr.rel (0) target = $region41
  $region40: #{lstm_forward.1} parent=0 // pred_region
    _
  $region41: #{lstm_forward.1} parent=0 // pred_fallthru
    _

</llo_original>
